<compile_context>
chip_gen: v5e
topology: v5e:2x2
jax: 0.10.0
libtpu: 0.0.40
codegen_flags: <defaults>
</compile_context>

<pallas_src>
import functools

import jax
import jax.numpy as jnp
from jax.experimental import pallas as pl
from jax.experimental.pallas import tpu as pltpu

NEG_SLOPE = 0.01  # nn.LeakyReLU default


# ---------------------------------------------------------------------------
# In-kernel helpers
# ---------------------------------------------------------------------------
def _f32(v):
    return v if v.dtype == jnp.float32 else v.astype(jnp.float32)


def _leaky_relu(x):
    return jnp.where(x > 0, x, NEG_SLOPE * x)


# ---------------------------------------------------------------------------
# Pallas kernel: one grid step == one group of parts
# ---------------------------------------------------------------------------
def _tfa_kernel(x_ref, w1a_ref, w2a_ref, w1b_ref, w2b_ref, out_ref):
    # x:   [s, n, K]   K = parts_per_group * c   (lane axis, multiple of 128)
    # w1a: [3K, H]     H = parts_per_group * hidden  (block-diag im2col weights)
    # w2a: [H, K]
    # w1b: [3K, H]
    # w2b: [3H, K]
    x = _f32(x_ref[0])
    w1a = _f32(w1a_ref[0])
    w2a = _f32(w2a_ref[0])
    w1b = _f32(w1b_ref[0])
    w2b = _f32(w2b_ref[0])

    s, n, K = x.shape
    H = w1a.shape[1]

    # ---- shared shifted temporal views (shifts along the LEADING axis) ----
    zpad = jnp.zeros((2, n, K), jnp.float32)
    ipad = jnp.full((2, n, K), -jnp.inf, jnp.float32)
    xz = jnp.concatenate([zpad, x, zpad], axis=0)   # zero pad   (conv / avg)
    xm = jnp.concatenate([ipad, x, ipad], axis=0)   # -inf pad   (max pool)
    vz = [xz[2 + t:2 + t + s] for t in (-2, -1, 0, 1, 2)]
    vm = [xm[2 + t:2 + t + s] for t in (-2, -1, 0, 1, 2)]

    # ---- pooling (AvgPool count_include_pad=True; MaxPool -inf padding) ----
    avg3 = (vz[1] + vz[2] + vz[3]) * (1.0 / 3.0)
    max3 = jnp.maximum(jnp.maximum(vm[1], vm[2]), vm[3])
    avg5 = (vz[0] + vz[1] + vz[2] + vz[3] + vz[4]) * (1.0 / 5.0)
    max5 = jnp.maximum(jnp.maximum(max3, vm[0]), vm[4])
    pooled3x1 = avg3 + max3                          # [s, n, K]
    pooled3x3 = avg5 + max5                          # [s, n, K]

    # ---- im2col over the 3 conv taps; one MXU dot per conv ----
    x_cat = jnp.concatenate([vz[1], vz[2], vz[3]], axis=-1)   # [s, n, 3K]
    x2d = x_cat.reshape(s * n, 3 * K)

    # 3x1 branch: Conv(c->h, k=3, pad=1) -> LeakyReLU -> Conv(h->c, k=1)
    h1 = _leaky_relu(jnp.dot(x2d, w1a, preferred_element_type=jnp.float32))
    logits1 = jnp.dot(h1, w2a, preferred_element_type=jnp.float32)
    f1 = pooled3x1 * jax.nn.sigmoid(logits1).reshape(s, n, K)

    # 3x3 branch: Conv(c->h, k=3, pad=1) -> LeakyReLU -> Conv(h->c, k=3, pad=1)
    h3 = _leaky_relu(jnp.dot(x2d, w1b, preferred_element_type=jnp.float32))
    h3 = h3.reshape(s, n, H)
    hz = jnp.concatenate(
        [jnp.zeros((1, n, H), jnp.float32), h3, jnp.zeros((1, n, H), jnp.float32)],
        axis=0)
    h_cat = jnp.concatenate([hz[0:s], hz[1:1 + s], hz[2:2 + s]], axis=-1)
    logits3 = jnp.dot(h_cat.reshape(s * n, 3 * H), w2b,
                      preferred_element_type=jnp.float32)
    f3 = pooled3x3 * jax.nn.sigmoid(logits3).reshape(s, n, K)

    # ---- temporal max-pooling over s (leading axis -> elementwise max) ----
    out_ref[0] = jnp.max(f1 + f3, axis=0).astype(out_ref.dtype)   # [n, K]


# ---------------------------------------------------------------------------
# Host-side weight packing: per-part Conv1d weights -> block-diagonal
# im2col matrices matching the kernel's part-major / channel-minor lane layout
# ---------------------------------------------------------------------------
def _pack_conv_k3(w, num_groups):
    """[p, c_out, c_in, 3] -> [G, 3*pg*c_in, pg*c_out] block-diag im2col."""
    p, co, ci, k = w.shape
    pg = p // num_groups
    w = w.reshape(num_groups, pg, co, ci, k)
    w = jnp.transpose(w, (0, 4, 1, 3, 2))               # [G, 3, pg, ci, co]
    eye = jnp.eye(pg, dtype=w.dtype)
    wb = jnp.einsum('gtpio,pq->gtpiqo', w, eye)         # block-diagonal in p
    return wb.reshape(num_groups, k * pg * ci, pg * co)


def _pack_conv_k1(w, num_groups):
    """[p, c_out, c_in] (k=1) -> [G, pg*c_in, pg*c_out] block-diag."""
    p, co, ci = w.shape
    pg = p // num_groups
    w = w.reshape(num_groups, pg, co, ci)
    w = jnp.transpose(w, (0, 1, 3, 2))                  # [G, pg, ci, co]
    eye = jnp.eye(pg, dtype=w.dtype)
    wb = jnp.einsum('gpio,pq->gpiqo', w, eye)
    return wb.reshape(num_groups, pg * ci, pg * co)


# ---------------------------------------------------------------------------
# Wrapper
# ---------------------------------------------------------------------------
@functools.partial(jax.jit, static_argnames=("num_groups",))
def temporal_feature_aggregator(x, w1_3x1, w2_3x1, w1_3x3, w2_3x3,
                                num_groups=2):
    """x: [n, s, c, p] -> ret: [n, p, c]  (matches the PyTorch module).

    num_groups=2: one part-group per TensorCore (best on v7x, ~free elsewhere).
    num_groups=1: fully collapsed single-step grid (best on v5e/v6e).
    """
    n, s, c, p = x.shape
    hidden = w1_3x1.shape[1]
    G = num_groups
    assert p % G == 0, "parts_num must be divisible by num_groups"
    pg = p // G
    K = pg * c
    H = pg * hidden

    # [n, s, c, p] -> [G, s, n, pg*c]: temporal axis leading, fused
    # part*channel axis last (lane-dense, part-major / channel-minor).
    xg = x.reshape(n, s, c, G, pg)
    xg = jnp.transpose(xg, (3, 1, 0, 4, 2)).reshape(G, s, n, K)

    w1a = _pack_conv_k3(w1_3x1, G)      # [G, 3K, H]
    w2a = _pack_conv_k1(w2_3x1, G)      # [G, H, K]
    w1b = _pack_conv_k3(w1_3x3, G)      # [G, 3K, H]
    w2b = _pack_conv_k3(w2_3x3, G)      # [G, 3H, K]

    out = pl.pallas_call(
        _tfa_kernel,
        out_shape=jax.ShapeDtypeStruct((G, n, K), x.dtype),
        grid=(G,),
        in_specs=[
            pl.BlockSpec((1, s, n, K), lambda g: (g, 0, 0, 0)),
            pl.BlockSpec((1, 3 * K, H), lambda g: (g, 0, 0)),
            pl.BlockSpec((1, H, K), lambda g: (g, 0, 0)),
            pl.BlockSpec((1, 3 * K, H), lambda g: (g, 0, 0)),
            pl.BlockSpec((1, 3 * H, K), lambda g: (g, 0, 0)),
        ],
        out_specs=pl.BlockSpec((1, n, K), lambda g: (g, 0, 0)),
        compiler_params=pltpu.CompilerParams(
            dimension_semantics=("parallel",)),
    )(xg, w1a, w2a, w1b, w2b)

    # Lane-dense kernel output [G, n, pg*c] -> [n, p, c]
    out = out.reshape(G, n, pg, c)
    return jnp.transpose(out, (1, 0, 2, 3)).reshape(n, p, c)


# ---------------------------------------------------------------------------
# Pure-JAX reference (same semantics, no Pallas) for a sanity check
# ---------------------------------------------------------------------------
def _ref_conv1d(inp, w, pad):
    # inp: [p, n, ci, s], w: [p, co, ci, k]
    k = w.shape[-1]
    s = inp.shape[-1]
    xp = jnp.pad(inp, ((0, 0), (0, 0), (0, 0), (pad, pad)))
    out = 0.0
    for tap in range(k):
        out = out + jnp.einsum('poc,pncs->pnos', w[..., tap],
                               xp[..., tap:tap + s])
    return out


def _ref_avg_pool(inp, k, pad):
    s = inp.shape[-1]
    xp = jnp.pad(inp, ((0, 0), (0, 0), (0, 0), (pad, pad)))
    return sum(xp[..., t:t + s] for t in range(k)) / float(k)


def _ref_max_pool(inp, k, pad):
    s = inp.shape[-1]
    xp = jnp.pad(inp, ((0, 0), (0, 0), (0, 0), (pad, pad)),
                 constant_values=-jnp.inf)
    out = xp[..., 0:s]
    for t in range(1, k):
        out = jnp.maximum(out, xp[..., t:t + s])
    return out


def _ref_forward(x, w1a, w2a, w1b, w2b):
    xp = jnp.transpose(x, (3, 0, 2, 1)).astype(jnp.float32)  # [p, n, c, s]

    h1 = _ref_conv1d(xp, w1a, 1)
    h1 = jnp.where(h1 > 0, h1, NEG_SLOPE * h1)
    logits1 = jnp.einsum('poh,pnhs->pnos', w2a, h1)
    f1 = (_ref_avg_pool(xp, 3, 1) + _ref_max_pool(xp, 3, 1)) * jax.nn.sigmoid(logits1)

    h3 = _ref_conv1d(xp, w1b, 1)
    h3 = jnp.where(h3 > 0, h3, NEG_SLOPE * h3)
    logits3 = _ref_conv1d(h3, w2b, 1)
    f3 = (_ref_avg_pool(xp, 5, 2) + _ref_max_pool(xp, 5, 2)) * jax.nn.sigmoid(logits3)

    ret = jnp.max(f1 + f3, axis=-1)          # [p, n, c]
    return jnp.transpose(ret, (1, 0, 2))     # [n, p, c]


# ---------------------------------------------------------------------------
if __name__ == "__main__":
    # Module hyperparameters: in_channels=32, squeeze=4 -> hidden=8, parts_num=16
    n, s, c, p = 2, 8, 32, 16
    hidden = c // 4

    key = jax.random.PRNGKey(0)
    k1, k2, k3, k4, kx = jax.random.split(key, 5)

    # Conv1d weights (bias=False), stacked per part:
    #   conv3x1: Conv1d(c, h, 3, pad=1) then Conv1d(h, c, 1)
    #   conv3x3: Conv1d(c, h, 3, pad=1) then Conv1d(h, c, 3, pad=1)
    w1_3x1 = 0.1 * jax.random.normal(k1, (p, hidden, c, 3), jnp.float32)
    w2_3x1 = 0.1 * jax.random.normal(k2, (p, c, hidden), jnp.float32)
    w1_3x3 = 0.1 * jax.random.normal(k3, (p, hidden, c, 3), jnp.float32)
    w2_3x3 = 0.1 * jax.random.normal(k4, (p, c, hidden, 3), jnp.float32)

    x = jax.random.normal(kx, (n, s, c, p), jnp.float32)

    ref = jax.block_until_ready(_ref_forward(x, w1_3x1, w2_3x1, w1_3x3, w2_3x3))

    # num_groups=2: one group per TensorCore (v7x); num_groups=1: fully collapsed.
    for groups in (2, 1):
        out = temporal_feature_aggregator(x, w1_3x1, w2_3x1, w1_3x3, w2_3x3,
                                          num_groups=groups)
        out = jax.block_until_ready(out)
        assert out.shape == (n, p, c), out.shape
        if not jnp.allclose(out, ref, atol=1e-4, rtol=1e-4):
            raise AssertionError(
                f"Pallas kernel (num_groups={groups}) does not match reference")

    print("KERNEL_OK")
</pallas_src>

<mosaic_0001>
module attributes {stable_mosaic.version = 11 : i64} {
  func.func @_tfa_kernel(%arg0: i32, %arg1: memref<1x8x2x256xf32, #tpu.memory_space<vmem>>, %arg2: memref<1x768x64xf32, #tpu.memory_space<vmem>>, %arg3: memref<1x64x256xf32, #tpu.memory_space<vmem>>, %arg4: memref<1x768x64xf32, #tpu.memory_space<vmem>>, %arg5: memref<1x192x256xf32, #tpu.memory_space<vmem>>, %arg6: memref<1x2x256xf32, #tpu.memory_space<vmem>>) attributes {dimension_semantics = [#tpu.dimension_semantics<parallel>], iteration_bounds = array<i64: 2>, scalar_prefetch = 0 : i64, scratch_operands = 0 : i64, tpu.core_type = #tpu.core_type<tc>, window_params = [{transform_indices = @transform_0, window_bounds = array<i64: 1, 8, 2, 256>}, {transform_indices = @transform_1, window_bounds = array<i64: 1, 768, 64>}, {transform_indices = @transform_2, window_bounds = array<i64: 1, 64, 256>}, {transform_indices = @transform_3, window_bounds = array<i64: 1, 768, 64>}, {transform_indices = @transform_4, window_bounds = array<i64: 1, 192, 256>}, {transform_indices = @transform_5, window_bounds = array<i64: 1, 2, 256>}]} {
    %c0 = arith.constant 0 : index
    %c0_0 = arith.constant 0 : index
    %c0_1 = arith.constant 0 : index
    %c0_2 = arith.constant 0 : index
    %0 = vector.load %arg1[%c0, %c0_0, %c0_1, %c0_2] : memref<1x8x2x256xf32, #tpu.memory_space<vmem>>, vector<1x8x2x256xf32>
    %1 = vector.shape_cast %0 : vector<1x8x2x256xf32> to vector<8x2x256xf32>
    %c0_3 = arith.constant 0 : index
    %c0_4 = arith.constant 0 : index
    %c0_5 = arith.constant 0 : index
    %2 = vector.load %arg2[%c0_3, %c0_4, %c0_5] : memref<1x768x64xf32, #tpu.memory_space<vmem>>, vector<1x768x64xf32>
    %3 = vector.shape_cast %2 : vector<1x768x64xf32> to vector<768x64xf32>
    %c0_6 = arith.constant 0 : index
    %c0_7 = arith.constant 0 : index
    %c0_8 = arith.constant 0 : index
    %4 = vector.load %arg3[%c0_6, %c0_7, %c0_8] : memref<1x64x256xf32, #tpu.memory_space<vmem>>, vector<1x64x256xf32>
    %5 = vector.shape_cast %4 : vector<1x64x256xf32> to vector<64x256xf32>
    %c0_9 = arith.constant 0 : index
    %c0_10 = arith.constant 0 : index
    %c0_11 = arith.constant 0 : index
    %6 = vector.load %arg4[%c0_9, %c0_10, %c0_11] : memref<1x768x64xf32, #tpu.memory_space<vmem>>, vector<1x768x64xf32>
    %7 = vector.shape_cast %6 : vector<1x768x64xf32> to vector<768x64xf32>
    %c0_12 = arith.constant 0 : index
    %c0_13 = arith.constant 0 : index
    %c0_14 = arith.constant 0 : index
    %8 = vector.load %arg5[%c0_12, %c0_13, %c0_14] : memref<1x192x256xf32, #tpu.memory_space<vmem>>, vector<1x192x256xf32>
    %9 = vector.shape_cast %8 : vector<1x192x256xf32> to vector<192x256xf32>
    %cst = arith.constant 0.000000e+00 : f32
    %10 = vector.broadcast %cst : f32 to vector<2x2x256xf32>
    %cst_15 = arith.constant 0xFF800000 : f32
    %11 = vector.broadcast %cst_15 : f32 to vector<2x2x256xf32>
    %12 = tpu.concatenate %10, %1, %10 in 0 : vector<2x2x256xf32>, vector<8x2x256xf32>, vector<2x2x256xf32> -> vector<12x2x256xf32>
    %13 = tpu.concatenate %11, %1, %11 in 0 : vector<2x2x256xf32>, vector<8x2x256xf32>, vector<2x2x256xf32> -> vector<12x2x256xf32>
    %14 = vector.extract_strided_slice %12 {offsets = [0, 0, 0], sizes = [8, 2, 256], strides = [1, 1, 1]} : vector<12x2x256xf32> to vector<8x2x256xf32>
    %15 = vector.extract_strided_slice %12 {offsets = [1, 0, 0], sizes = [8, 2, 256], strides = [1, 1, 1]} : vector<12x2x256xf32> to vector<8x2x256xf32>
    %16 = vector.extract_strided_slice %12 {offsets = [2, 0, 0], sizes = [8, 2, 256], strides = [1, 1, 1]} : vector<12x2x256xf32> to vector<8x2x256xf32>
    %17 = vector.extract_strided_slice %12 {offsets = [3, 0, 0], sizes = [8, 2, 256], strides = [1, 1, 1]} : vector<12x2x256xf32> to vector<8x2x256xf32>
    %18 = vector.extract_strided_slice %12 {offsets = [4, 0, 0], sizes = [8, 2, 256], strides = [1, 1, 1]} : vector<12x2x256xf32> to vector<8x2x256xf32>
    %19 = vector.extract_strided_slice %13 {offsets = [0, 0, 0], sizes = [8, 2, 256], strides = [1, 1, 1]} : vector<12x2x256xf32> to vector<8x2x256xf32>
    %20 = vector.extract_strided_slice %13 {offsets = [1, 0, 0], sizes = [8, 2, 256], strides = [1, 1, 1]} : vector<12x2x256xf32> to vector<8x2x256xf32>
    %21 = vector.extract_strided_slice %13 {offsets = [2, 0, 0], sizes = [8, 2, 256], strides = [1, 1, 1]} : vector<12x2x256xf32> to vector<8x2x256xf32>
    %22 = vector.extract_strided_slice %13 {offsets = [3, 0, 0], sizes = [8, 2, 256], strides = [1, 1, 1]} : vector<12x2x256xf32> to vector<8x2x256xf32>
    %23 = vector.extract_strided_slice %13 {offsets = [4, 0, 0], sizes = [8, 2, 256], strides = [1, 1, 1]} : vector<12x2x256xf32> to vector<8x2x256xf32>
    %24 = arith.addf %15, %16 : vector<8x2x256xf32>
    %25 = arith.addf %24, %17 : vector<8x2x256xf32>
    %cst_16 = arith.constant 0.333333343 : f32
    %26 = vector.broadcast %cst_16 : f32 to vector<8x2x256xf32>
    %27 = arith.mulf %25, %26 : vector<8x2x256xf32>
    %28 = arith.maximumf %20, %21 : vector<8x2x256xf32>
    %29 = arith.maximumf %28, %22 : vector<8x2x256xf32>
    %30 = arith.addf %14, %15 : vector<8x2x256xf32>
    %31 = arith.addf %30, %16 : vector<8x2x256xf32>
    %32 = arith.addf %31, %17 : vector<8x2x256xf32>
    %33 = arith.addf %32, %18 : vector<8x2x256xf32>
    %cst_17 = arith.constant 2.000000e-01 : f32
    %34 = vector.broadcast %cst_17 : f32 to vector<8x2x256xf32>
    %35 = arith.mulf %33, %34 : vector<8x2x256xf32>
    %36 = arith.maximumf %29, %19 : vector<8x2x256xf32>
    %37 = arith.maximumf %36, %23 : vector<8x2x256xf32>
    %38 = arith.addf %27, %29 : vector<8x2x256xf32>
    %39 = arith.addf %35, %37 : vector<8x2x256xf32>
    %40 = tpu.concatenate %15, %16, %17 in 2 : vector<8x2x256xf32>, vector<8x2x256xf32>, vector<8x2x256xf32> -> vector<8x2x768xf32>
    %41 = vector.shape_cast %40 : vector<8x2x768xf32> to vector<16x768xf32>
    %cst_18 = arith.constant dense<0.000000e+00> : vector<16x64xf32>
    %42 = tpu.matmul %41, %3, %cst_18 {dimension_numbers = #tpu.dot_dimension_numbers<[1], [0], [0], [1], [0, 0, 1, 1], [], []>} : vector<16x768xf32>, vector<768x64xf32>, vector<16x64xf32> -> vector<16x64xf32>
    %cst_19 = arith.constant 0.000000e+00 : f32
    %43 = vector.broadcast %cst_19 : f32 to vector<16x64xf32>
    %44 = arith.cmpf ogt, %42, %43 : vector<16x64xf32>
    %cst_20 = arith.constant 0.00999999977 : f32
    %45 = vector.broadcast %cst_20 : f32 to vector<16x64xf32>
    %46 = arith.mulf %45, %42 : vector<16x64xf32>
    %47 = arith.select %44, %42, %46 : vector<16x64xi1>, vector<16x64xf32>
    %cst_21 = arith.constant dense<0.000000e+00> : vector<16x256xf32>
    %48 = tpu.matmul %47, %5, %cst_21 {dimension_numbers = #tpu.dot_dimension_numbers<[1], [0], [0], [1], [0, 0, 1, 1], [], []>} : vector<16x64xf32>, vector<64x256xf32>, vector<16x256xf32> -> vector<16x256xf32>
    %49 = arith.negf %48 : vector<16x256xf32>
    %50 = math.exp %49 : vector<16x256xf32>
    %cst_22 = arith.constant 1.000000e+00 : f32
    %51 = vector.broadcast %cst_22 : f32 to vector<16x256xf32>
    %52 = arith.addf %51, %50 : vector<16x256xf32>
    %53 = arith.divf %51, %52 : vector<16x256xf32>
    %54 = vector.shape_cast %53 : vector<16x256xf32> to vector<8x2x256xf32>
    %55 = arith.mulf %38, %54 : vector<8x2x256xf32>
    %cst_23 = arith.constant dense<0.000000e+00> : vector<16x64xf32>
    %56 = tpu.matmul %41, %7, %cst_23 {dimension_numbers = #tpu.dot_dimension_numbers<[1], [0], [0], [1], [0, 0, 1, 1], [], []>} : vector<16x768xf32>, vector<768x64xf32>, vector<16x64xf32> -> vector<16x64xf32>
    %cst_24 = arith.constant 0.000000e+00 : f32
    %57 = vector.broadcast %cst_24 : f32 to vector<16x64xf32>
    %58 = arith.cmpf ogt, %56, %57 : vector<16x64xf32>
    %cst_25 = arith.constant 0.00999999977 : f32
    %59 = vector.broadcast %cst_25 : f32 to vector<16x64xf32>
    %60 = arith.mulf %59, %56 : vector<16x64xf32>
    %61 = arith.select %58, %56, %60 : vector<16x64xi1>, vector<16x64xf32>
    %62 = vector.shape_cast %61 : vector<16x64xf32> to vector<8x2x64xf32>
    %cst_26 = arith.constant 0.000000e+00 : f32
    %63 = vector.broadcast %cst_26 : f32 to vector<1x2x64xf32>
    %cst_27 = arith.constant 0.000000e+00 : f32
    %64 = vector.broadcast %cst_27 : f32 to vector<1x2x64xf32>
    %65 = tpu.concatenate %63, %62, %64 in 0 : vector<1x2x64xf32>, vector<8x2x64xf32>, vector<1x2x64xf32> -> vector<10x2x64xf32>
    %66 = vector.extract_strided_slice %65 {offsets = [0, 0, 0], sizes = [8, 2, 64], strides = [1, 1, 1]} : vector<10x2x64xf32> to vector<8x2x64xf32>
    %67 = vector.extract_strided_slice %65 {offsets = [1, 0, 0], sizes = [8, 2, 64], strides = [1, 1, 1]} : vector<10x2x64xf32> to vector<8x2x64xf32>
    %68 = vector.extract_strided_slice %65 {offsets = [2, 0, 0], sizes = [8, 2, 64], strides = [1, 1, 1]} : vector<10x2x64xf32> to vector<8x2x64xf32>
    %69 = tpu.concatenate %66, %67, %68 in 2 : vector<8x2x64xf32>, vector<8x2x64xf32>, vector<8x2x64xf32> -> vector<8x2x192xf32>
    %70 = vector.shape_cast %69 : vector<8x2x192xf32> to vector<16x192xf32>
    %cst_28 = arith.constant dense<0.000000e+00> : vector<16x256xf32>
    %71 = tpu.matmul %70, %9, %cst_28 {dimension_numbers = #tpu.dot_dimension_numbers<[1], [0], [0], [1], [0, 0, 1, 1], [], []>} : vector<16x192xf32>, vector<192x256xf32>, vector<16x256xf32> -> vector<16x256xf32>
    %72 = arith.negf %71 : vector<16x256xf32>
    %73 = math.exp %72 : vector<16x256xf32>
    %cst_29 = arith.constant 1.000000e+00 : f32
    %74 = vector.broadcast %cst_29 : f32 to vector<16x256xf32>
    %75 = arith.addf %74, %73 : vector<16x256xf32>
    %76 = arith.divf %74, %75 : vector<16x256xf32>
    %77 = vector.shape_cast %76 : vector<16x256xf32> to vector<8x2x256xf32>
    %78 = arith.mulf %39, %77 : vector<8x2x256xf32>
    %79 = arith.addf %55, %78 : vector<8x2x256xf32>
    %cst_30 = arith.constant dense<0xFF800000> : vector<2x256xf32>
    %80 = vector.multi_reduction <maximumf>, %79, %cst_30 [0] : vector<8x2x256xf32> to vector<2x256xf32>
    %c0_31 = arith.constant 0 : index
    %c0_32 = arith.constant 0 : index
    %c0_33 = arith.constant 0 : index
    %81 = vector.load %arg6[%c0_31, %c0_32, %c0_33] : memref<1x2x256xf32, #tpu.memory_space<vmem>>, vector<1x2x256xf32>
    %82 = vector.shape_cast %81 : vector<1x2x256xf32> to vector<2x256xf32>
    %83 = vector.shape_cast %80 : vector<2x256xf32> to vector<1x2x256xf32>
    tpu.vector_store %arg6[%c0_31, %c0_32, %c0_33], %83 {strides = array<i32>} : memref<1x2x256xf32, #tpu.memory_space<vmem>>, vector<1x2x256xf32>,
    return
  }
  func.func @transform_0(%arg0: i32) -> (i32, i32, i32, i32) {
    %c0_i32 = arith.constant 0 : i32
    %c0_i32_0 = arith.constant 0 : i32
    %c0_i32_1 = arith.constant 0 : i32
    %c0_i32_2 = arith.constant 0 : i32
    return %arg0, %c0_i32, %c0_i32_0, %c0_i32_1 : i32, i32, i32, i32
  }
  func.func @transform_1(%arg0: i32) -> (i32, i32, i32) {
    %c0_i32 = arith.constant 0 : i32
    %c0_i32_0 = arith.constant 0 : i32
    %c0_i32_1 = arith.constant 0 : i32
    return %arg0, %c0_i32, %c0_i32_0 : i32, i32, i32
  }
  func.func @transform_2(%arg0: i32) -> (i32, i32, i32) {
    %c0_i32 = arith.constant 0 : i32
    %c0_i32_0 = arith.constant 0 : i32
    %c0_i32_1 = arith.constant 0 : i32
    return %arg0, %c0_i32, %c0_i32_0 : i32, i32, i32
  }
  func.func @transform_3(%arg0: i32) -> (i32, i32, i32) {
    %c0_i32 = arith.constant 0 : i32
    %c0_i32_0 = arith.constant 0 : i32
    %c0_i32_1 = arith.constant 0 : i32
    return %arg0, %c0_i32, %c0_i32_0 : i32, i32, i32
  }
  func.func @transform_4(%arg0: i32) -> (i32, i32, i32) {
    %c0_i32 = arith.constant 0 : i32
    %c0_i32_0 = arith.constant 0 : i32
    %c0_i32_1 = arith.constant 0 : i32
    return %arg0, %c0_i32, %c0_i32_0 : i32, i32, i32
  }
  func.func @transform_5(%arg0: i32) -> (i32, i32, i32) {
    %c0_i32 = arith.constant 0 : i32
    %c0_i32_0 = arith.constant 0 : i32
    %c0_i32_1 = arith.constant 0 : i32
    return %arg0, %c0_i32, %c0_i32_0 : i32, i32, i32
  }
}

</mosaic_0001>

<llo_original>
// kernel: temporal_feature_aggregator.1
$region0: #{temporal_feature_aggregator.1}
  #allocation0 [shape = 'u32[]', space=smem, size = 0x4, offset = 0x4, fixed_abs, tag = 'smem constant byte address 0x4 - core index']
  #allocation1 [shape = 'u32[72,128]{1,0:T(1,128)}', space=vmem, size = 0x9000, scoped, tag = 'internal scratch']
  %s0 = inlined_call_operand.vmem [shape: f32[2,8,2,256], index: 0, kind: input, shape index: {}]
  %s1 = inlined_call_operand.vmem [shape: f32[2,768,64], index: 1, kind: input, shape index: {}]
  %s2 = inlined_call_operand.vmem [shape: f32[2,64,256], index: 2, kind: input, shape index: {}]
  %s3 = inlined_call_operand.vmem [shape: f32[2,768,64], index: 3, kind: input, shape index: {}]
  %s4 = inlined_call_operand.vmem [shape: f32[2,192,256], index: 4, kind: input, shape index: {}]
  %s5 = inlined_call_operand.vmem [shape: f32[2,2,256], index: 5, kind: output, shape index: {}]
  %s6 = sld [smem:[#allocation0]]
  $region53: #{temporal_feature_aggregator.1} parent=0
    _
  %s8 = ssub.s32 1, %s6
  %s9 = scalar_select 0, %s8, %s6
  loop: start=0, step=1, limit=4
  $region2: #{temporal_feature_aggregator.1} parent=0 // loop_pre_header
    _
  $region3: #{temporal_feature_aggregator.1} parent=0 // loop_header
    %s11 = sphi 0, %s15
    %p12 = scmp.ge.s32.totalorder %s11, 4
    %s21 = sphi 0, %s23
    %s24 = sphi 0, %s21
    %s25 = sphi 0, %s24
    %s41 = sphi 0, %s25
    %s47 = sphi 0, %s49
    %s50 = sphi 0, %s47
    %s51 = sphi 0, %s50
    %s67 = sphi 0, %s51
    %s73 = sphi 0, %s75
    %s76 = sphi 0, %s73
    %s77 = sphi 0, %s76
    %s93 = sphi 0, %s77
    %s99 = sphi 0, %s101
    %s102 = sphi 0, %s99
    %s103 = sphi 0, %s102
    %s119 = sphi 0, %s103
    %s125 = sphi 0, %s127
    %s128 = sphi 0, %s125
    %s129 = sphi 0, %s128
    %s145 = sphi 0, %s129
    %s151 = sphi 0, %s153
    %s154 = sphi 0, %s151
    %s155 = sphi 0, %s154
    %s171 = sphi 0, %s155
  $region4: #{temporal_feature_aggregator.1} parent=0 // loop_header_branch
    %14 = sbr.rel (%p12) target = $region8
  $region5: #{temporal_feature_aggregator.1} parent=0 // loop_body
    %s16 = ssub.s32 %s11, 1
    %s17 = ssub.s32 %s11, 2
    %s18 = sadd.s32 %s11, 1
    %s19 = ssub.s32 %s11, %s18
    %p20 = scmp.eq.s32.totalorder %s19, 0
    %s22 = sadd.s32 %s21, 1
    %s23 = scalar_select %p20, %s21, %s22
    %p26 = pneg %p20
    %p27 = scmp.eq.s32.totalorder %s11, 1
    %p28 = por %p26, %p27
    %p29 = scmp.ne.s32.totalorder %s21, %s24
    %p30 = scmp.eq.s32.totalorder %s11, 0
    %p31 = por %p29, %p30
    %p32 = scmp.ne.s32.totalorder %s21, %s24
    %p33 = scmp.eq.s32.totalorder %s16, 1
    %p34 = por %p32, %p33
    %p35 = scmp.ne.s32.totalorder %s24, %s25
    %p36 = scmp.eq.s32.totalorder %s16, 0
    %p37 = por %p35, %p36
    %p38 = scmp.ne.s32.totalorder %s24, %s25
    %p39 = scmp.eq.s32.totalorder %s17, 1
    %p40 = por %p38, %p39
    %p42 = scmp.ne.s32.totalorder %s25, %s41
    %p43 = scmp.eq.s32.totalorder %s17, 0
    %p44 = por %p42, %p43
    %s45 = ssub.s32 %s11, %s18
    %p46 = scmp.eq.s32.totalorder %s45, 0
    %s48 = sadd.s32 %s47, 1
    %s49 = scalar_select %p46, %s47, %s48
    %p52 = pneg %p46
    %p53 = scmp.eq.s32.totalorder %s11, 1
    %p54 = por %p52, %p53
    %p55 = scmp.ne.s32.totalorder %s47, %s50
    %p56 = scmp.eq.s32.totalorder %s11, 0
    %p57 = por %p55, %p56
    %p58 = scmp.ne.s32.totalorder %s47, %s50
    %p59 = scmp.eq.s32.totalorder %s16, 1
    %p60 = por %p58, %p59
    %p61 = scmp.ne.s32.totalorder %s50, %s51
    %p62 = scmp.eq.s32.totalorder %s16, 0
    %p63 = por %p61, %p62
    %p64 = scmp.ne.s32.totalorder %s50, %s51
    %p65 = scmp.eq.s32.totalorder %s17, 1
    %p66 = por %p64, %p65
    %p68 = scmp.ne.s32.totalorder %s51, %s67
    %p69 = scmp.eq.s32.totalorder %s17, 0
    %p70 = por %p68, %p69
    %s71 = ssub.s32 %s11, %s18
    %p72 = scmp.eq.s32.totalorder %s71, 0
    %s74 = sadd.s32 %s73, 1
    %s75 = scalar_select %p72, %s73, %s74
    %p78 = pneg %p72
    %p79 = scmp.eq.s32.totalorder %s11, 1
    %p80 = por %p78, %p79
    %p81 = scmp.ne.s32.totalorder %s73, %s76
    %p82 = scmp.eq.s32.totalorder %s11, 0
    %p83 = por %p81, %p82
    %p84 = scmp.ne.s32.totalorder %s73, %s76
    %p85 = scmp.eq.s32.totalorder %s16, 1
    %p86 = por %p84, %p85
    %p87 = scmp.ne.s32.totalorder %s76, %s77
    %p88 = scmp.eq.s32.totalorder %s16, 0
    %p89 = por %p87, %p88
    %p90 = scmp.ne.s32.totalorder %s76, %s77
    %p91 = scmp.eq.s32.totalorder %s17, 1
    %p92 = por %p90, %p91
    %p94 = scmp.ne.s32.totalorder %s77, %s93
    %p95 = scmp.eq.s32.totalorder %s17, 0
    %p96 = por %p94, %p95
    %s97 = ssub.s32 %s11, %s18
    %p98 = scmp.eq.s32.totalorder %s97, 0
    %s100 = sadd.s32 %s99, 1
    %s101 = scalar_select %p98, %s99, %s100
    %p104 = pneg %p98
    %p105 = scmp.eq.s32.totalorder %s11, 1
    %p106 = por %p104, %p105
    %p107 = scmp.ne.s32.totalorder %s99, %s102
    %p108 = scmp.eq.s32.totalorder %s11, 0
    %p109 = por %p107, %p108
    %p110 = scmp.ne.s32.totalorder %s99, %s102
    %p111 = scmp.eq.s32.totalorder %s16, 1
    %p112 = por %p110, %p111
    %p113 = scmp.ne.s32.totalorder %s102, %s103
    %p114 = scmp.eq.s32.totalorder %s16, 0
    %p115 = por %p113, %p114
    %p116 = scmp.ne.s32.totalorder %s102, %s103
    %p117 = scmp.eq.s32.totalorder %s17, 1
    %p118 = por %p116, %p117
    %p120 = scmp.ne.s32.totalorder %s103, %s119
    %p121 = scmp.eq.s32.totalorder %s17, 0
    %p122 = por %p120, %p121
    %s123 = ssub.s32 %s11, %s18
    %p124 = scmp.eq.s32.totalorder %s123, 0
    %s126 = sadd.s32 %s125, 1
    %s127 = scalar_select %p124, %s125, %s126
    %p130 = pneg %p124
    %p131 = scmp.eq.s32.totalorder %s11, 1
    %p132 = por %p130, %p131
    %p133 = scmp.ne.s32.totalorder %s125, %s128
    %p134 = scmp.eq.s32.totalorder %s11, 0
    %p135 = por %p133, %p134
    %p136 = scmp.ne.s32.totalorder %s125, %s128
    %p137 = scmp.eq.s32.totalorder %s16, 1
    %p138 = por %p136, %p137
    %p139 = scmp.ne.s32.totalorder %s128, %s129
    %p140 = scmp.eq.s32.totalorder %s16, 0
    %p141 = por %p139, %p140
    %p142 = scmp.ne.s32.totalorder %s128, %s129
    %p143 = scmp.eq.s32.totalorder %s17, 1
    %p144 = por %p142, %p143
    %p146 = scmp.ne.s32.totalorder %s129, %s145
    %p147 = scmp.eq.s32.totalorder %s17, 0
    %p148 = por %p146, %p147
    %s149 = ssub.s32 %s11, %s18
    %p150 = scmp.eq.s32.totalorder %s149, 0
    %s152 = sadd.s32 %s151, 1
    %s153 = scalar_select %p150, %s151, %s152
    %p156 = pneg %p150
    %p157 = scmp.eq.s32.totalorder %s11, 1
    %p158 = por %p156, %p157
    %p159 = scmp.ne.s32.totalorder %s151, %s154
    %p160 = scmp.eq.s32.totalorder %s11, 0
    %p161 = por %p159, %p160
    %p162 = scmp.ne.s32.totalorder %s151, %s154
    %p163 = scmp.eq.s32.totalorder %s16, 1
    %p164 = por %p162, %p163
    %p165 = scmp.ne.s32.totalorder %s154, %s155
    %p166 = scmp.eq.s32.totalorder %s16, 0
    %p167 = por %p165, %p166
    %p168 = scmp.ne.s32.totalorder %s154, %s155
    %p169 = scmp.eq.s32.totalorder %s17, 1
    %p170 = por %p168, %p169
    %p172 = scmp.ne.s32.totalorder %s155, %s171
    %p173 = scmp.eq.s32.totalorder %s17, 0
    %p174 = por %p172, %p173
    %p175 = scmp.le.s32.totalorder 1, %s11
    %p176 = scmp.lt.s32.totalorder %s11, 3
    %p177 = pnand %p175, %p176
    %p178 = pneg %p177
    // Predicated region
    $region9: #{temporal_feature_aggregator.1} parent=5 // pred_check
      _
    $region10: #{temporal_feature_aggregator.1} parent=5 // pred_check_branch
      %180 = sbr.rel (%p177) target = $region12
    $region11: #{temporal_feature_aggregator.1} parent=5 // pred_region
      %s181 = ssub.s32 %s11, 1
    $region12: #{temporal_feature_aggregator.1} parent=5 // pred_fallthru
      _
    %p182 = scmp.lt.s32.totalorder %s11, 2
    // Predicated region
    $region13: #{temporal_feature_aggregator.1} parent=5 // pred_check
      %p183 = pneg %p182
    $region14: #{temporal_feature_aggregator.1} parent=5 // pred_check_branch
      %185 = sbr.rel (%p183) target = $region16
    $region15: #{temporal_feature_aggregator.1} parent=5 // pred_region
      // Predicated region
      $region17: #{temporal_feature_aggregator.1} parent=15 // pred_check
        %p186 = pneg %p31
      $region18: #{temporal_feature_aggregator.1} parent=15 // pred_check_branch
        %188 = sbr.rel (%p186) target = $region20
      $region19: #{temporal_feature_aggregator.1} parent=15 // pred_region
        %p189 = scmp.lt.s32.totalorder %s11, 1
        %s190 = scalar_select %p189, %s11, 1
        %s191 = smul.addr %s190, 16
        %s192 = smul.addr %s191, 2
        %s193 = scalar_lea.vmem %s0, %s192
      $region20: #{temporal_feature_aggregator.1} parent=15 // pred_fallthru
        _
      // Predicated region
      $region21: #{temporal_feature_aggregator.1} parent=15 // pred_check
        %p194 = pneg %p57
      $region22: #{temporal_feature_aggregator.1} parent=15 // pred_check_branch
        %196 = sbr.rel (%p194) target = $region24
      $region23: #{temporal_feature_aggregator.1} parent=15 // pred_region
        %p197 = scmp.lt.s32.totalorder %s11, 1
        %s198 = scalar_select %p197, %s11, 1
        %s199 = smul.addr %s198, 96
        %s200 = smul.addr %s199, 8
        %s201 = scalar_lea.vmem %s1, %s200
      $region24: #{temporal_feature_aggregator.1} parent=15 // pred_fallthru
        _
      // Predicated region
      $region25: #{temporal_feature_aggregator.1} parent=15 // pred_check
        %p202 = pneg %p83
      $region26: #{temporal_feature_aggregator.1} parent=15 // pred_check_branch
        %204 = sbr.rel (%p202) target = $region28
      $region27: #{temporal_feature_aggregator.1} parent=15 // pred_region
        %p205 = scmp.lt.s32.totalorder %s11, 1
        %s206 = scalar_select %p205, %s11, 1
        %s207 = smul.addr %s206, 16
        %s208 = smul.addr %s207, 8
        %s209 = scalar_lea.vmem %s2, %s208
      $region28: #{temporal_feature_aggregator.1} parent=15 // pred_fallthru
        _
      // Predicated region
      $region29: #{temporal_feature_aggregator.1} parent=15 // pred_check
        %p210 = pneg %p109
      $region30: #{temporal_feature_aggregator.1} parent=15 // pred_check_branch
        %212 = sbr.rel (%p210) target = $region32
      $region31: #{temporal_feature_aggregator.1} parent=15 // pred_region
        %p213 = scmp.lt.s32.totalorder %s11, 1
        %s214 = scalar_select %p213, %s11, 1
        %s215 = smul.addr %s214, 96
        %s216 = smul.addr %s215, 8
        %s217 = scalar_lea.vmem %s3, %s216
      $region32: #{temporal_feature_aggregator.1} parent=15 // pred_fallthru
        _
      // Predicated region
      $region33: #{temporal_feature_aggregator.1} parent=15 // pred_check
        %p218 = pneg %p135
      $region34: #{temporal_feature_aggregator.1} parent=15 // pred_check_branch
        %220 = sbr.rel (%p218) target = $region36
      $region35: #{temporal_feature_aggregator.1} parent=15 // pred_region
        %p221 = scmp.lt.s32.totalorder %s11, 1
        %s222 = scalar_select %p221, %s11, 1
        %s223 = smul.addr %s222, 48
        %s224 = smul.addr %s223, 8
        %s225 = scalar_lea.vmem %s4, %s224
      $region36: #{temporal_feature_aggregator.1} parent=15 // pred_fallthru
        _
    $region16: #{temporal_feature_aggregator.1} parent=5 // pred_fallthru
      _
    %p226 = scmp.le.s32.totalorder 1, %s11
    %p227 = scmp.lt.s32.totalorder %s11, 3
    %p228 = pnand %p226, %p227
    %p229 = pneg %p228
    // Predicated region
    $region37: #{temporal_feature_aggregator.1} parent=5 // pred_check
      _
    $region38: #{temporal_feature_aggregator.1} parent=5 // pred_check_branch
      %231 = sbr.rel (%p228) target = $region40
    $region39: #{temporal_feature_aggregator.1} parent=5 // pred_region
      %s232 = ssub.s32 %s11, 1
      %p233 = scmp.lt.s32.totalorder %s16, 1
      %s234 = scalar_select %p233, %s16, 1
      %s235 = smul.addr %s234, 16
      %s236 = smul.addr %s235, 2
      %s237 = scalar_lea.vmem %s0, %s236
      %p238 = pneg %p37
      %p239 = pneg %p34
      %p240 = scmp.lt.s32.totalorder %s16, 1
      %s241 = scalar_select %p240, %s16, 1
      %s242 = smul.addr %s241, 96
      %s243 = smul.addr %s242, 8
      %s244 = scalar_lea.vmem %s1, %s243
      %p245 = pneg %p63
      %p246 = pneg %p60
      %p247 = scmp.lt.s32.totalorder %s16, 1
      %s248 = scalar_select %p247, %s16, 1
      %s249 = smul.addr %s248, 16
      %s250 = smul.addr %s249, 8
      %s251 = scalar_lea.vmem %s2, %s250
      %p252 = pneg %p89
      %p253 = pneg %p86
      %p254 = scmp.lt.s32.totalorder %s16, 1
      %s255 = scalar_select %p254, %s16, 1
      %s256 = smul.addr %s255, 96
      %s257 = smul.addr %s256, 8
      %s258 = scalar_lea.vmem %s3, %s257
      %p259 = pneg %p115
      %p260 = pneg %p112
      %p261 = scmp.lt.s32.totalorder %s16, 1
      %s262 = scalar_select %p261, %s16, 1
      %s263 = smul.addr %s262, 48
      %s264 = smul.addr %s263, 8
      %s265 = scalar_lea.vmem %s4, %s264
      %p266 = pneg %p141
      %p267 = pneg %p138
      %p268 = pneg %p167
      %p269 = pneg %p164
      %p270 = scmp.lt.s32.totalorder %s16, 1
      %s271 = scalar_select %p270, %s16, 1
      %s272 = smul.addr %s271, 2
      %s273 = smul.addr %s272, 2
      %s274 = scalar_lea.vmem %s5, %s273
      %p275 = scmp.lt.s32.totalorder %s16, 1
      %s276 = scalar_select %p275, %s16, 1
      %s277 = smul.addr %s276, 16
      %s278 = smul.addr %s277, 2
      %s279 = scalar_lea.vmem %s0, %s278
      %p280 = scmp.lt.s32.totalorder %s16, 1
      %s281 = scalar_select %p280, %s16, 1
      %s282 = smul.addr %s281, 96
      %s283 = smul.addr %s282, 8
      %s284 = scalar_lea.vmem %s1, %s283
      %p285 = scmp.lt.s32.totalorder %s16, 1
      %s286 = scalar_select %p285, %s16, 1
      %s287 = smul.addr %s286, 16
      %s288 = smul.addr %s287, 8
      %s289 = scalar_lea.vmem %s2, %s288
      %p290 = scmp.lt.s32.totalorder %s16, 1
      %s291 = scalar_select %p290, %s16, 1
      %s292 = smul.addr %s291, 96
      %s293 = smul.addr %s292, 8
      %s294 = scalar_lea.vmem %s3, %s293
      %p295 = scmp.lt.s32.totalorder %s16, 1
      %s296 = scalar_select %p295, %s16, 1
      %s297 = smul.addr %s296, 48
      %s298 = smul.addr %s297, 8
      %s299 = scalar_lea.vmem %s4, %s298
      %p300 = scmp.lt.s32.totalorder %s16, 1
      %s301 = scalar_select %p300, %s16, 1
      %s302 = smul.addr %s301, 2
      %s303 = smul.addr %s302, 2
      %s304 = scalar_lea.vmem %s5, %s303
      %v305 = vld [vmem:[%s279] sm:$0xf]
      %v306 = vld [vmem:[%s279 + $0x4] sm:$0xf]
      %v307 = vld [vmem:[%s279 + $0x8] sm:$0xf]
      %v308 = vld [vmem:[%s279 + $0xc] sm:$0xf]
      %v309 = vld [vmem:[%s279 + $0x10] sm:$0xf]
      %v310 = vld [vmem:[%s279 + $0x14] sm:$0xf]
      %v311 = vld [vmem:[%s279 + $0x18] sm:$0xf]
      %v312 = vld [vmem:[%s279 + $0x1c] sm:$0xf]
      %v313 = vld [vmem:[%s284] sm:$0xff]
      %v314 = vld [vmem:[%s284 + $0x8] sm:$0xff]
      %v315 = vld [vmem:[%s284 + $0x10] sm:$0xff]
      %v316 = vld [vmem:[%s284 + $0x18] sm:$0xff]
      %v317 = vld [vmem:[%s284 + $0x20] sm:$0xff]
      %v318 = vld [vmem:[%s284 + $0x28] sm:$0xff]
      %v319 = vld [vmem:[%s284 + $0x30] sm:$0xff]
      %v320 = vld [vmem:[%s284 + $0x38] sm:$0xff]
      %v321 = vld [vmem:[%s284 + $0x40] sm:$0xff]
      %v322 = vld [vmem:[%s284 + $0x48] sm:$0xff]
      %v323 = vld [vmem:[%s284 + $0x50] sm:$0xff]
      %v324 = vld [vmem:[%s284 + $0x58] sm:$0xff]
      %v325 = vld [vmem:[%s284 + $0x60] sm:$0xff]
      %v326 = vld [vmem:[%s284 + $0x68] sm:$0xff]
      %v327 = vld [vmem:[%s284 + $0x70] sm:$0xff]
      %v328 = vld [vmem:[%s284 + $0x78] sm:$0xff]
      %v329 = vld [vmem:[%s284 + $0x80] sm:$0xff]
      %v330 = vld [vmem:[%s284 + $0x88] sm:$0xff]
      %v331 = vld [vmem:[%s284 + $0x90] sm:$0xff]
      %v332 = vld [vmem:[%s284 + $0x98] sm:$0xff]
      %v333 = vld [vmem:[%s284 + $0xa0] sm:$0xff]
      %v334 = vld [vmem:[%s284 + $0xa8] sm:$0xff]
      %v335 = vld [vmem:[%s284 + $0xb0] sm:$0xff]
      %v336 = vld [vmem:[%s284 + $0xb8] sm:$0xff]
      %v337 = vld [vmem:[%s284 + $0xc0] sm:$0xff]
      %v338 = vld [vmem:[%s284 + $0xc8] sm:$0xff]
      %v339 = vld [vmem:[%s284 + $0xd0] sm:$0xff]
      %v340 = vld [vmem:[%s284 + $0xd8] sm:$0xff]
      %v341 = vld [vmem:[%s284 + $0xe0] sm:$0xff]
      %v342 = vld [vmem:[%s284 + $0xe8] sm:$0xff]
      %v343 = vld [vmem:[%s284 + $0xf0] sm:$0xff]
      %v344 = vld [vmem:[%s284 + $0xf8] sm:$0xff]
      %v345 = vld [vmem:[%s284 + $0x100] sm:$0xff]
      %v346 = vld [vmem:[%s284 + $0x108] sm:$0xff]
      %v347 = vld [vmem:[%s284 + $0x110] sm:$0xff]
      %v348 = vld [vmem:[%s284 + $0x118] sm:$0xff]
      %v349 = vld [vmem:[%s284 + $0x120] sm:$0xff]
      %v350 = vld [vmem:[%s284 + $0x128] sm:$0xff]
      %v351 = vld [vmem:[%s284 + $0x130] sm:$0xff]
      %v352 = vld [vmem:[%s284 + $0x138] sm:$0xff]
      %v353 = vld [vmem:[%s284 + $0x140] sm:$0xff]
      %v354 = vld [vmem:[%s284 + $0x148] sm:$0xff]
      %v355 = vld [vmem:[%s284 + $0x150] sm:$0xff]
      %v356 = vld [vmem:[%s284 + $0x158] sm:$0xff]
      %v357 = vld [vmem:[%s284 + $0x160] sm:$0xff]
      %v358 = vld [vmem:[%s284 + $0x168] sm:$0xff]
      %v359 = vld [vmem:[%s284 + $0x170] sm:$0xff]
      %v360 = vld [vmem:[%s284 + $0x178] sm:$0xff]
      %v361 = vld [vmem:[%s284 + $0x180] sm:$0xff]
      %v362 = vld [vmem:[%s284 + $0x188] sm:$0xff]
      %v363 = vld [vmem:[%s284 + $0x190] sm:$0xff]
      %v364 = vld [vmem:[%s284 + $0x198] sm:$0xff]
      %v365 = vld [vmem:[%s284 + $0x1a0] sm:$0xff]
      %v366 = vld [vmem:[%s284 + $0x1a8] sm:$0xff]
      %v367 = vld [vmem:[%s284 + $0x1b0] sm:$0xff]
      %v368 = vld [vmem:[%s284 + $0x1b8] sm:$0xff]
      %v369 = vld [vmem:[%s284 + $0x1c0] sm:$0xff]
      %v370 = vld [vmem:[%s284 + $0x1c8] sm:$0xff]
      %v371 = vld [vmem:[%s284 + $0x1d0] sm:$0xff]
      %v372 = vld [vmem:[%s284 + $0x1d8] sm:$0xff]
      %v373 = vld [vmem:[%s284 + $0x1e0] sm:$0xff]
      %v374 = vld [vmem:[%s284 + $0x1e8] sm:$0xff]
      %v375 = vld [vmem:[%s284 + $0x1f0] sm:$0xff]
      %v376 = vld [vmem:[%s284 + $0x1f8] sm:$0xff]
      %v377 = vld [vmem:[%s284 + $0x200] sm:$0xff]
      %v378 = vld [vmem:[%s284 + $0x208] sm:$0xff]
      %v379 = vld [vmem:[%s284 + $0x210] sm:$0xff]
      %v380 = vld [vmem:[%s284 + $0x218] sm:$0xff]
      %v381 = vld [vmem:[%s284 + $0x220] sm:$0xff]
      %v382 = vld [vmem:[%s284 + $0x228] sm:$0xff]
      %v383 = vld [vmem:[%s284 + $0x230] sm:$0xff]
      %v384 = vld [vmem:[%s284 + $0x238] sm:$0xff]
      %v385 = vld [vmem:[%s284 + $0x240] sm:$0xff]
      %v386 = vld [vmem:[%s284 + $0x248] sm:$0xff]
      %v387 = vld [vmem:[%s284 + $0x250] sm:$0xff]
      %v388 = vld [vmem:[%s284 + $0x258] sm:$0xff]
      %v389 = vld [vmem:[%s284 + $0x260] sm:$0xff]
      %v390 = vld [vmem:[%s284 + $0x268] sm:$0xff]
      %v391 = vld [vmem:[%s284 + $0x270] sm:$0xff]
      %v392 = vld [vmem:[%s284 + $0x278] sm:$0xff]
      %v393 = vld [vmem:[%s284 + $0x280] sm:$0xff]
      %v394 = vld [vmem:[%s284 + $0x288] sm:$0xff]
      %v395 = vld [vmem:[%s284 + $0x290] sm:$0xff]
      %v396 = vld [vmem:[%s284 + $0x298] sm:$0xff]
      %v397 = vld [vmem:[%s284 + $0x2a0] sm:$0xff]
      %v398 = vld [vmem:[%s284 + $0x2a8] sm:$0xff]
      %v399 = vld [vmem:[%s284 + $0x2b0] sm:$0xff]
      %v400 = vld [vmem:[%s284 + $0x2b8] sm:$0xff]
      %v401 = vld [vmem:[%s284 + $0x2c0] sm:$0xff]
      %v402 = vld [vmem:[%s284 + $0x2c8] sm:$0xff]
      %v403 = vld [vmem:[%s284 + $0x2d0] sm:$0xff]
      %v404 = vld [vmem:[%s284 + $0x2d8] sm:$0xff]
      %v405 = vld [vmem:[%s284 + $0x2e0] sm:$0xff]
      %v406 = vld [vmem:[%s284 + $0x2e8] sm:$0xff]
      %v407 = vld [vmem:[%s284 + $0x2f0] sm:$0xff]
      %v408 = vld [vmem:[%s284 + $0x2f8] sm:$0xff]
      %v409 = vld [vmem:[%s289] sm:$0xff]
      %v410 = vld [vmem:[%s289 + $0x8] sm:$0xff]
      %v411 = vld [vmem:[%s289 + $0x10] sm:$0xff]
      %v412 = vld [vmem:[%s289 + $0x18] sm:$0xff]
      %v413 = vld [vmem:[%s289 + $0x20] sm:$0xff]
      %v414 = vld [vmem:[%s289 + $0x28] sm:$0xff]
      %v415 = vld [vmem:[%s289 + $0x30] sm:$0xff]
      %v416 = vld [vmem:[%s289 + $0x38] sm:$0xff]
      %v417 = vld [vmem:[%s289 + $0x40] sm:$0xff]
      %v418 = vld [vmem:[%s289 + $0x48] sm:$0xff]
      %v419 = vld [vmem:[%s289 + $0x50] sm:$0xff]
      %v420 = vld [vmem:[%s289 + $0x58] sm:$0xff]
      %v421 = vld [vmem:[%s289 + $0x60] sm:$0xff]
      %v422 = vld [vmem:[%s289 + $0x68] sm:$0xff]
      %v423 = vld [vmem:[%s289 + $0x70] sm:$0xff]
      %v424 = vld [vmem:[%s289 + $0x78] sm:$0xff]
      %v425 = vld [vmem:[%s294] sm:$0xff]
      %v426 = vld [vmem:[%s294 + $0x8] sm:$0xff]
      %v427 = vld [vmem:[%s294 + $0x10] sm:$0xff]
      %v428 = vld [vmem:[%s294 + $0x18] sm:$0xff]
      %v429 = vld [vmem:[%s294 + $0x20] sm:$0xff]
      %v430 = vld [vmem:[%s294 + $0x28] sm:$0xff]
      %v431 = vld [vmem:[%s294 + $0x30] sm:$0xff]
      %v432 = vld [vmem:[%s294 + $0x38] sm:$0xff]
      %v433 = vld [vmem:[%s294 + $0x40] sm:$0xff]
      %v434 = vld [vmem:[%s294 + $0x48] sm:$0xff]
      %v435 = vld [vmem:[%s294 + $0x50] sm:$0xff]
      %v436 = vld [vmem:[%s294 + $0x58] sm:$0xff]
      %v437 = vld [vmem:[%s294 + $0x60] sm:$0xff]
      %v438 = vld [vmem:[%s294 + $0x68] sm:$0xff]
      %v439 = vld [vmem:[%s294 + $0x70] sm:$0xff]
      %v440 = vld [vmem:[%s294 + $0x78] sm:$0xff]
      %v441 = vld [vmem:[%s294 + $0x80] sm:$0xff]
      %v442 = vld [vmem:[%s294 + $0x88] sm:$0xff]
      %v443 = vld [vmem:[%s294 + $0x90] sm:$0xff]
      %v444 = vld [vmem:[%s294 + $0x98] sm:$0xff]
      %v445 = vld [vmem:[%s294 + $0xa0] sm:$0xff]
      %v446 = vld [vmem:[%s294 + $0xa8] sm:$0xff]
      %v447 = vld [vmem:[%s294 + $0xb0] sm:$0xff]
      %v448 = vld [vmem:[%s294 + $0xb8] sm:$0xff]
      %v449 = vld [vmem:[%s294 + $0xc0] sm:$0xff]
      %v450 = vld [vmem:[%s294 + $0xc8] sm:$0xff]
      %v451 = vld [vmem:[%s294 + $0xd0] sm:$0xff]
      %v452 = vld [vmem:[%s294 + $0xd8] sm:$0xff]
      %v453 = vld [vmem:[%s294 + $0xe0] sm:$0xff]
      %v454 = vld [vmem:[%s294 + $0xe8] sm:$0xff]
      %v455 = vld [vmem:[%s294 + $0xf0] sm:$0xff]
      %v456 = vld [vmem:[%s294 + $0xf8] sm:$0xff]
      %v457 = vld [vmem:[%s294 + $0x100] sm:$0xff]
      %v458 = vld [vmem:[%s294 + $0x108] sm:$0xff]
      %v459 = vld [vmem:[%s294 + $0x110] sm:$0xff]
      %v460 = vld [vmem:[%s294 + $0x118] sm:$0xff]
      %v461 = vld [vmem:[%s294 + $0x120] sm:$0xff]
      %v462 = vld [vmem:[%s294 + $0x128] sm:$0xff]
      %v463 = vld [vmem:[%s294 + $0x130] sm:$0xff]
      %v464 = vld [vmem:[%s294 + $0x138] sm:$0xff]
      %v465 = vld [vmem:[%s294 + $0x140] sm:$0xff]
      %v466 = vld [vmem:[%s294 + $0x148] sm:$0xff]
      %v467 = vld [vmem:[%s294 + $0x150] sm:$0xff]
      %v468 = vld [vmem:[%s294 + $0x158] sm:$0xff]
      %v469 = vld [vmem:[%s294 + $0x160] sm:$0xff]
      %v470 = vld [vmem:[%s294 + $0x168] sm:$0xff]
      %v471 = vld [vmem:[%s294 + $0x170] sm:$0xff]
      %v472 = vld [vmem:[%s294 + $0x178] sm:$0xff]
      %v473 = vld [vmem:[%s294 + $0x180] sm:$0xff]
      %v474 = vld [vmem:[%s294 + $0x188] sm:$0xff]
      %v475 = vld [vmem:[%s294 + $0x190] sm:$0xff]
      %v476 = vld [vmem:[%s294 + $0x198] sm:$0xff]
      %v477 = vld [vmem:[%s294 + $0x1a0] sm:$0xff]
      %v478 = vld [vmem:[%s294 + $0x1a8] sm:$0xff]
      %v479 = vld [vmem:[%s294 + $0x1b0] sm:$0xff]
      %v480 = vld [vmem:[%s294 + $0x1b8] sm:$0xff]
      %v481 = vld [vmem:[%s294 + $0x1c0] sm:$0xff]
      %v482 = vld [vmem:[%s294 + $0x1c8] sm:$0xff]
      %v483 = vld [vmem:[%s294 + $0x1d0] sm:$0xff]
      %v484 = vld [vmem:[%s294 + $0x1d8] sm:$0xff]
      %v485 = vld [vmem:[%s294 + $0x1e0] sm:$0xff]
      %v486 = vld [vmem:[%s294 + $0x1e8] sm:$0xff]
      %v487 = vld [vmem:[%s294 + $0x1f0] sm:$0xff]
      %v488 = vld [vmem:[%s294 + $0x1f8] sm:$0xff]
      %v489 = vld [vmem:[%s294 + $0x200] sm:$0xff]
      %v490 = vld [vmem:[%s294 + $0x208] sm:$0xff]
      %v491 = vld [vmem:[%s294 + $0x210] sm:$0xff]
      %v492 = vld [vmem:[%s294 + $0x218] sm:$0xff]
      %v493 = vld [vmem:[%s294 + $0x220] sm:$0xff]
      %v494 = vld [vmem:[%s294 + $0x228] sm:$0xff]
      %v495 = vld [vmem:[%s294 + $0x230] sm:$0xff]
      %v496 = vld [vmem:[%s294 + $0x238] sm:$0xff]
      %v497 = vld [vmem:[%s294 + $0x240] sm:$0xff]
      %v498 = vld [vmem:[%s294 + $0x248] sm:$0xff]
      %v499 = vld [vmem:[%s294 + $0x250] sm:$0xff]
      %v500 = vld [vmem:[%s294 + $0x258] sm:$0xff]
      %v501 = vld [vmem:[%s294 + $0x260] sm:$0xff]
      %v502 = vld [vmem:[%s294 + $0x268] sm:$0xff]
      %v503 = vld [vmem:[%s294 + $0x270] sm:$0xff]
      %v504 = vld [vmem:[%s294 + $0x278] sm:$0xff]
      %v505 = vld [vmem:[%s294 + $0x280] sm:$0xff]
      %v506 = vld [vmem:[%s294 + $0x288] sm:$0xff]
      %v507 = vld [vmem:[%s294 + $0x290] sm:$0xff]
      %v508 = vld [vmem:[%s294 + $0x298] sm:$0xff]
      %v509 = vld [vmem:[%s294 + $0x2a0] sm:$0xff]
      %v510 = vld [vmem:[%s294 + $0x2a8] sm:$0xff]
      %v511 = vld [vmem:[%s294 + $0x2b0] sm:$0xff]
      %v512 = vld [vmem:[%s294 + $0x2b8] sm:$0xff]
      %v513 = vld [vmem:[%s294 + $0x2c0] sm:$0xff]
      %v514 = vld [vmem:[%s294 + $0x2c8] sm:$0xff]
      %v515 = vld [vmem:[%s294 + $0x2d0] sm:$0xff]
      %v516 = vld [vmem:[%s294 + $0x2d8] sm:$0xff]
      %v517 = vld [vmem:[%s294 + $0x2e0] sm:$0xff]
      %v518 = vld [vmem:[%s294 + $0x2e8] sm:$0xff]
      %v519 = vld [vmem:[%s294 + $0x2f0] sm:$0xff]
      %v520 = vld [vmem:[%s294 + $0x2f8] sm:$0xff]
      %v521 = vld [vmem:[%s299] sm:$0xff]
      %v522 = vld [vmem:[%s299 + $0x8] sm:$0xff]
      %v523 = vld [vmem:[%s299 + $0x10] sm:$0xff]
      %v524 = vld [vmem:[%s299 + $0x18] sm:$0xff]
      %v525 = vld [vmem:[%s299 + $0x20] sm:$0xff]
      %v526 = vld [vmem:[%s299 + $0x28] sm:$0xff]
      %v527 = vld [vmem:[%s299 + $0x30] sm:$0xff]
      %v528 = vld [vmem:[%s299 + $0x38] sm:$0xff]
      %v529 = vld [vmem:[%s299 + $0x40] sm:$0xff]
      %v530 = vld [vmem:[%s299 + $0x48] sm:$0xff]
      %v531 = vld [vmem:[%s299 + $0x50] sm:$0xff]
      %v532 = vld [vmem:[%s299 + $0x58] sm:$0xff]
      %v533 = vld [vmem:[%s299 + $0x60] sm:$0xff]
      %v534 = vld [vmem:[%s299 + $0x68] sm:$0xff]
      %v535 = vld [vmem:[%s299 + $0x70] sm:$0xff]
      %v536 = vld [vmem:[%s299 + $0x78] sm:$0xff]
      %v537 = vld [vmem:[%s299 + $0x80] sm:$0xff]
      %v538 = vld [vmem:[%s299 + $0x88] sm:$0xff]
      %v539 = vld [vmem:[%s299 + $0x90] sm:$0xff]
      %v540 = vld [vmem:[%s299 + $0x98] sm:$0xff]
      %v541 = vld [vmem:[%s299 + $0xa0] sm:$0xff]
      %v542 = vld [vmem:[%s299 + $0xa8] sm:$0xff]
      %v543 = vld [vmem:[%s299 + $0xb0] sm:$0xff]
      %v544 = vld [vmem:[%s299 + $0xb8] sm:$0xff]
      %v545 = vld [vmem:[%s299 + $0xc0] sm:$0xff]
      %v546 = vld [vmem:[%s299 + $0xc8] sm:$0xff]
      %v547 = vld [vmem:[%s299 + $0xd0] sm:$0xff]
      %v548 = vld [vmem:[%s299 + $0xd8] sm:$0xff]
      %v549 = vld [vmem:[%s299 + $0xe0] sm:$0xff]
      %v550 = vld [vmem:[%s299 + $0xe8] sm:$0xff]
      %v551 = vld [vmem:[%s299 + $0xf0] sm:$0xff]
      %v552 = vld [vmem:[%s299 + $0xf8] sm:$0xff]
      %v553 = vld [vmem:[%s299 + $0x100] sm:$0xff]
      %v554 = vld [vmem:[%s299 + $0x108] sm:$0xff]
      %v555 = vld [vmem:[%s299 + $0x110] sm:$0xff]
      %v556 = vld [vmem:[%s299 + $0x118] sm:$0xff]
      %v557 = vld [vmem:[%s299 + $0x120] sm:$0xff]
      %v558 = vld [vmem:[%s299 + $0x128] sm:$0xff]
      %v559 = vld [vmem:[%s299 + $0x130] sm:$0xff]
      %v560 = vld [vmem:[%s299 + $0x138] sm:$0xff]
      %v561 = vld [vmem:[%s299 + $0x140] sm:$0xff]
      %v562 = vld [vmem:[%s299 + $0x148] sm:$0xff]
      %v563 = vld [vmem:[%s299 + $0x150] sm:$0xff]
      %v564 = vld [vmem:[%s299 + $0x158] sm:$0xff]
      %v565 = vld [vmem:[%s299 + $0x160] sm:$0xff]
      %v566 = vld [vmem:[%s299 + $0x168] sm:$0xff]
      %v567 = vld [vmem:[%s299 + $0x170] sm:$0xff]
      %v568 = vld [vmem:[%s299 + $0x178] sm:$0xff]
      %577 = vst [vmem:[#allocation1] ss:$4 sm:$0xff] %v305
      %v578 = vld.sshfl [vmem:[#allocation1] sm:$0xff pattern:$0x73625140]
      %v579 = vld.sshfl [vmem:[#allocation1 + $0x8] sm:$0xff pattern:$0x73625140]
      %s580 = scalar_lea.vmem [#allocation1], 32
      %581 = vst [vmem:[%s580] ss:$4 sm:$0xff] %v306
      %v582 = vld.sshfl [vmem:[#allocation1 + $0x20] sm:$0xff pattern:$0x73625140]
      %v583 = vld.sshfl [vmem:[#allocation1 + $0x28] sm:$0xff pattern:$0x73625140]
      %584 = vst [vmem:[#allocation1] ss:$4 sm:$0xff] %v307
      %v585 = vld.sshfl [vmem:[#allocation1] sm:$0xff pattern:$0x73625140]
      %v586 = vld.sshfl [vmem:[#allocation1 + $0x8] sm:$0xff pattern:$0x73625140]
      %587 = vst [vmem:[%s580] ss:$4 sm:$0xff] %v308
      %v588 = vld.sshfl [vmem:[#allocation1 + $0x20] sm:$0xff pattern:$0x73625140]
      %v589 = vld.sshfl [vmem:[#allocation1 + $0x28] sm:$0xff pattern:$0x73625140]
      %590 = vst [vmem:[#allocation1] ss:$4 sm:$0xff] %v309
      %v591 = vld.sshfl [vmem:[#allocation1] sm:$0xff pattern:$0x73625140]
      %v592 = vld.sshfl [vmem:[#allocation1 + $0x8] sm:$0xff pattern:$0x73625140]
      %593 = vst [vmem:[%s580] ss:$4 sm:$0xff] %v310
      %v594 = vld.sshfl [vmem:[#allocation1 + $0x20] sm:$0xff pattern:$0x73625140]
      %v595 = vld.sshfl [vmem:[#allocation1 + $0x28] sm:$0xff pattern:$0x73625140]
      %596 = vst [vmem:[#allocation1] ss:$4 sm:$0xff] %v311
      %v597 = vld.sshfl [vmem:[#allocation1] sm:$0xff pattern:$0x73625140]
      %v598 = vld.sshfl [vmem:[#allocation1 + $0x8] sm:$0xff pattern:$0x73625140]
      %599 = vst [vmem:[%s580] ss:$4 sm:$0xff] %v312
      %v600 = vld.sshfl [vmem:[#allocation1 + $0x20] sm:$0xff pattern:$0x73625140]
      %v601 = vld.sshfl [vmem:[#allocation1 + $0x28] sm:$0xff pattern:$0x73625140]
      %618 = vst [vmem:[#allocation1] ss:$4 sm:$0xff] %v305
      %v619 = vld.sshfl [vmem:[#allocation1] sm:$0xff pattern:$0x73625140]
      %v620 = vld.sshfl [vmem:[#allocation1 + $0x8] sm:$0xff pattern:$0x73625140]
      %s621 = scalar_lea.vmem [#allocation1], 32
      %622 = vst [vmem:[%s621] ss:$4 sm:$0xff] %v306
      %v623 = vld.sshfl [vmem:[#allocation1 + $0x20] sm:$0xff pattern:$0x73625140]
      %v624 = vld.sshfl [vmem:[#allocation1 + $0x28] sm:$0xff pattern:$0x73625140]
      %625 = vst [vmem:[#allocation1] ss:$4 sm:$0xff] %v307
      %v626 = vld.sshfl [vmem:[#allocation1] sm:$0xff pattern:$0x73625140]
      %v627 = vld.sshfl [vmem:[#allocation1 + $0x8] sm:$0xff pattern:$0x73625140]
      %628 = vst [vmem:[%s621] ss:$4 sm:$0xff] %v308
      %v629 = vld.sshfl [vmem:[#allocation1 + $0x20] sm:$0xff pattern:$0x73625140]
      %v630 = vld.sshfl [vmem:[#allocation1 + $0x28] sm:$0xff pattern:$0x73625140]
      %631 = vst [vmem:[#allocation1] ss:$4 sm:$0xff] %v309
      %v632 = vld.sshfl [vmem:[#allocation1] sm:$0xff pattern:$0x73625140]
      %v633 = vld.sshfl [vmem:[#allocation1 + $0x8] sm:$0xff pattern:$0x73625140]
      %634 = vst [vmem:[%s621] ss:$4 sm:$0xff] %v310
      %v635 = vld.sshfl [vmem:[#allocation1 + $0x20] sm:$0xff pattern:$0x73625140]
      %v636 = vld.sshfl [vmem:[#allocation1 + $0x28] sm:$0xff pattern:$0x73625140]
      %637 = vst [vmem:[#allocation1] ss:$4 sm:$0xff] %v311
      %v638 = vld.sshfl [vmem:[#allocation1] sm:$0xff pattern:$0x73625140]
      %v639 = vld.sshfl [vmem:[#allocation1 + $0x8] sm:$0xff pattern:$0x73625140]
      %640 = vst [vmem:[%s621] ss:$4 sm:$0xff] %v312
      %v641 = vld.sshfl [vmem:[#allocation1 + $0x20] sm:$0xff pattern:$0x73625140]
      %v642 = vld.sshfl [vmem:[#allocation1 + $0x28] sm:$0xff pattern:$0x73625140]
      %v659 = vadd.f32 %v578, 0.0
      %v660 = vadd.f32 %v579, 0.0
      %v661 = vadd.f32 %v578, %v582
      %v662 = vadd.f32 %v579, %v583
      %v663 = vadd.f32 %v582, %v585
      %v664 = vadd.f32 %v583, %v586
      %v665 = vadd.f32 %v585, %v588
      %v666 = vadd.f32 %v586, %v589
      %v667 = vadd.f32 %v588, %v591
      %v668 = vadd.f32 %v589, %v592
      %v669 = vadd.f32 %v591, %v594
      %v670 = vadd.f32 %v592, %v595
      %v671 = vadd.f32 %v594, %v597
      %v672 = vadd.f32 %v595, %v598
      %v673 = vadd.f32 %v597, %v600
      %v674 = vadd.f32 %v598, %v601
      %v675 = vadd.f32 %v659, %v582
      %v676 = vadd.f32 %v660, %v583
      %v677 = vadd.f32 %v661, %v585
      %v678 = vadd.f32 %v662, %v586
      %v679 = vadd.f32 %v663, %v588
      %v680 = vadd.f32 %v664, %v589
      %v681 = vadd.f32 %v665, %v591
      %v682 = vadd.f32 %v666, %v592
      %v683 = vadd.f32 %v667, %v594
      %v684 = vadd.f32 %v668, %v595
      %v685 = vadd.f32 %v669, %v597
      %v686 = vadd.f32 %v670, %v598
      %v687 = vadd.f32 %v671, %v600
      %v688 = vadd.f32 %v672, %v601
      %v689 = vadd.f32 %v673, 0.0
      %v690 = vadd.f32 %v674, 0.0
      %v691 = vmul.f32 %v675, 0.33333334
      %v692 = vmul.f32 %v676, 0.33333334
      %v693 = vmul.f32 %v677, 0.33333334
      %v694 = vmul.f32 %v678, 0.33333334
      %v695 = vmul.f32 %v679, 0.33333334
      %v696 = vmul.f32 %v680, 0.33333334
      %v697 = vmul.f32 %v681, 0.33333334
      %v698 = vmul.f32 %v682, 0.33333334
      %v699 = vmul.f32 %v683, 0.33333334
      %v700 = vmul.f32 %v684, 0.33333334
      %v701 = vmul.f32 %v685, 0.33333334
      %v702 = vmul.f32 %v686, 0.33333334
      %v703 = vmul.f32 %v687, 0.33333334
      %v704 = vmul.f32 %v688, 0.33333334
      %v705 = vmul.f32 %v689, 0.33333334
      %v706 = vmul.f32 %v690, 0.33333334
      %v707 = vmax.f32 %v619, %v623
      %v708 = vmax.f32 %v620, %v624
      %v709 = vmax.f32 %v623, %v626
      %v710 = vmax.f32 %v624, %v627
      %v711 = vmax.f32 %v626, %v629
      %v712 = vmax.f32 %v627, %v630
      %v713 = vmax.f32 %v629, %v632
      %v714 = vmax.f32 %v630, %v633
      %v715 = vmax.f32 %v632, %v635
      %v716 = vmax.f32 %v633, %v636
      %v717 = vmax.f32 %v635, %v638
      %v718 = vmax.f32 %v636, %v639
      %v719 = vmax.f32 %v638, %v641
      %v720 = vmax.f32 %v639, %v642
      %v721 = vmax.f32 %v707, %v626
      %v722 = vmax.f32 %v708, %v627
      %v723 = vmax.f32 %v709, %v629
      %v724 = vmax.f32 %v710, %v630
      %v725 = vmax.f32 %v711, %v632
      %v726 = vmax.f32 %v712, %v633
      %v727 = vmax.f32 %v713, %v635
      %v728 = vmax.f32 %v714, %v636
      %v729 = vmax.f32 %v715, %v638
      %v730 = vmax.f32 %v716, %v639
      %v731 = vmax.f32 %v717, %v641
      %v732 = vmax.f32 %v718, %v642
      %v733 = vadd.f32 %v675, %v585
      %v734 = vadd.f32 %v676, %v586
      %v735 = vadd.f32 %v677, %v588
      %v736 = vadd.f32 %v678, %v589
      %v737 = vadd.f32 %v679, %v591
      %v738 = vadd.f32 %v680, %v592
      %v739 = vadd.f32 %v681, %v594
      %v740 = vadd.f32 %v682, %v595
      %v741 = vadd.f32 %v683, %v597
      %v742 = vadd.f32 %v684, %v598
      %v743 = vadd.f32 %v685, %v600
      %v744 = vadd.f32 %v686, %v601
      %v745 = vadd.f32 %v687, 0.0
      %v746 = vadd.f32 %v688, 0.0
      %v747 = vadd.f32 %v733, %v588
      %v748 = vadd.f32 %v734, %v589
      %v749 = vadd.f32 %v735, %v591
      %v750 = vadd.f32 %v736, %v592
      %v751 = vadd.f32 %v737, %v594
      %v752 = vadd.f32 %v738, %v595
      %v753 = vadd.f32 %v739, %v597
      %v754 = vadd.f32 %v740, %v598
      %v755 = vadd.f32 %v741, %v600
      %v756 = vadd.f32 %v742, %v601
      %v757 = vadd.f32 %v743, 0.0
      %v758 = vadd.f32 %v744, 0.0
      %v759 = vadd.f32 %v745, 0.0
      %v760 = vadd.f32 %v746, 0.0
      %v761 = vmul.f32 %v733, 0.2
      %v762 = vmul.f32 %v734, 0.2
      %v763 = vmul.f32 %v747, 0.2
      %v764 = vmul.f32 %v748, 0.2
      %v765 = vmul.f32 %v749, 0.2
      %v766 = vmul.f32 %v750, 0.2
      %v767 = vmul.f32 %v751, 0.2
      %v768 = vmul.f32 %v752, 0.2
      %v769 = vmul.f32 %v753, 0.2
      %v770 = vmul.f32 %v754, 0.2
      %v771 = vmul.f32 %v755, 0.2
      %v772 = vmul.f32 %v756, 0.2
      %v773 = vmul.f32 %v757, 0.2
      %v774 = vmul.f32 %v758, 0.2
      %v775 = vmul.f32 %v759, 0.2
      %v776 = vmul.f32 %v760, 0.2
      %v777 = vmax.f32 %v723, %v619
      %v778 = vmax.f32 %v724, %v620
      %v779 = vmax.f32 %v725, %v623
      %v780 = vmax.f32 %v726, %v624
      %v781 = vmax.f32 %v727, %v626
      %v782 = vmax.f32 %v728, %v627
      %v783 = vmax.f32 %v729, %v629
      %v784 = vmax.f32 %v730, %v630
      %v785 = vmax.f32 %v731, %v632
      %v786 = vmax.f32 %v732, %v633
      %v787 = vmax.f32 %v719, %v635
      %v788 = vmax.f32 %v720, %v636
      %v789 = vmax.f32 %v721, %v629
      %v790 = vmax.f32 %v722, %v630
      %v791 = vmax.f32 %v777, %v632
      %v792 = vmax.f32 %v778, %v633
      %v793 = vmax.f32 %v779, %v635
      %v794 = vmax.f32 %v780, %v636
      %v795 = vmax.f32 %v781, %v638
      %v796 = vmax.f32 %v782, %v639
      %v797 = vmax.f32 %v783, %v641
      %v798 = vmax.f32 %v784, %v642
      %v799 = vadd.f32 %v691, %v707
      %v800 = vadd.f32 %v692, %v708
      %v801 = vadd.f32 %v693, %v721
      %v802 = vadd.f32 %v694, %v722
      %v803 = vadd.f32 %v695, %v723
      %v804 = vadd.f32 %v696, %v724
      %v805 = vadd.f32 %v697, %v725
      %v806 = vadd.f32 %v698, %v726
      %v807 = vadd.f32 %v699, %v727
      %v808 = vadd.f32 %v700, %v728
      %v809 = vadd.f32 %v701, %v729
      %v810 = vadd.f32 %v702, %v730
      %v811 = vadd.f32 %v703, %v731
      %v812 = vadd.f32 %v704, %v732
      %v813 = vadd.f32 %v705, %v719
      %v814 = vadd.f32 %v706, %v720
      %v815 = vadd.f32 %v761, %v721
      %v816 = vadd.f32 %v762, %v722
      %v817 = vadd.f32 %v763, %v789
      %v818 = vadd.f32 %v764, %v790
      %v819 = vadd.f32 %v765, %v791
      %v820 = vadd.f32 %v766, %v792
      %v821 = vadd.f32 %v767, %v793
      %v822 = vadd.f32 %v768, %v794
      %v823 = vadd.f32 %v769, %v795
      %v824 = vadd.f32 %v770, %v796
      %v825 = vadd.f32 %v771, %v797
      %v826 = vadd.f32 %v772, %v798
      %v827 = vadd.f32 %v773, %v785
      %v828 = vadd.f32 %v774, %v786
      %v829 = vadd.f32 %v775, %v787
      %v830 = vadd.f32 %v776, %v788
      %v832 = vrot.slane 0.0, 6
      %v833 = vrot.slane %v578, 4
      %v834 = vrot.slane %v579, 2
      %v835 = vrot.slane %v583, 6
      %v836 = vrot.slane %v579, 6
      %v837 = vrot.slane %v582, 4
      %v838 = vrot.slane %v583, 2
      %v839 = vrot.slane %v586, 6
      %v840 = vrot.slane %v585, 4
      %v841 = vrot.slane %v586, 2
      %v842 = vrot.slane %v589, 6
      %v843 = vrot.slane %v588, 4
      %v844 = vrot.slane %v589, 2
      %v845 = vrot.slane %v592, 6
      %v846 = vrot.slane %v591, 4
      %v847 = vrot.slane %v592, 2
      %v848 = vrot.slane %v595, 6
      %v849 = vrot.slane %v594, 4
      %v850 = vrot.slane %v595, 2
      %v851 = vrot.slane %v598, 6
      %v852 = vrot.slane %v597, 4
      %v853 = vrot.slane %v598, 2
      %v854 = vrot.slane %v601, 6
      %v855 = vrot.slane %v600, 4
      %v856 = vrot.slane %v601, 2
      %vm857 = vcmask 1041408
      %v858 = vsel %vm857, 0.0, %v832
      %vm859 = vcmask 1045508
      %v860 = vsel %vm859, %v833, %v834
      %vm861 = vcmask 1043456
      %v862 = vsel %vm861, %v858, %v860
      %v863 = vsel %vm857, %v582, %v835
      %v864 = vsel %vm857, %v578, %v836
      %v865 = vsel %vm859, %v837, %v838
      %v866 = vsel %vm861, %v864, %v865
      %v867 = vsel %vm857, %v585, %v839
      %v868 = vsel %vm859, %v840, %v841
      %v869 = vsel %vm861, %v863, %v868
      %v870 = vsel %vm857, %v588, %v842
      %v871 = vsel %vm859, %v843, %v844
      %v872 = vsel %vm861, %v867, %v871
      %v873 = vsel %vm857, %v591, %v845
      %v874 = vsel %vm859, %v846, %v847
      %v875 = vsel %vm861, %v870, %v874
      %v876 = vsel %vm857, %v594, %v848
      %v877 = vsel %vm859, %v849, %v850
      %v878 = vsel %vm861, %v873, %v877
      %v879 = vsel %vm857, %v597, %v851
      %v880 = vsel %vm859, %v852, %v853
      %v881 = vsel %vm861, %v876, %v880
      %v882 = vsel %vm857, %v600, %v854
      %v883 = vsel %vm859, %v855, %v856
      %v884 = vsel %vm861, %v879, %v883
      %885 = vst [vmem:[#allocation1] ss:$4 sm:$0xff] %v862
      %s886 = scalar_lea.vmem [#allocation1], 1
      %887 = vst [vmem:[%s886] ss:$4 sm:$0xff] %v866
      %s888 = scalar_lea.vmem [#allocation1], 2
      %889 = vst [vmem:[%s888] ss:$4 sm:$0xff] %v869
      %s890 = scalar_lea.vmem [#allocation1], 3
      %891 = vst [vmem:[%s890] ss:$4 sm:$0xff] %v872
      %s892 = scalar_lea.vmem [#allocation1], 32
      %893 = vst [vmem:[%s892] ss:$4 sm:$0xff] %v863
      %s894 = scalar_lea.vmem [#allocation1], 33
      %895 = vst [vmem:[%s894] ss:$4 sm:$0xff] %v867
      %s896 = scalar_lea.vmem [#allocation1], 34
      %897 = vst [vmem:[%s896] ss:$4 sm:$0xff] %v870
      %s898 = scalar_lea.vmem [#allocation1], 35
      %899 = vst [vmem:[%s898] ss:$4 sm:$0xff] %v873
      %v900 = vld.sshfl [vmem:[#allocation1] sm:$0xff pattern:$0x73625140]
      %v901 = vld.sshfl [vmem:[#allocation1 + $0x8] sm:$0xff pattern:$0x73625140]
      %v902 = vld.sshfl [vmem:[#allocation1 + $0x10] sm:$0xff pattern:$0x73625140]
      %v903 = vld.sshfl [vmem:[#allocation1 + $0x18] sm:$0xff pattern:$0x73625140]
      %v904 = vld.sshfl [vmem:[#allocation1 + $0x20] sm:$0xff pattern:$0x73625140]
      %v905 = vld.sshfl [vmem:[#allocation1 + $0x28] sm:$0xff pattern:$0x73625140]
      %906 = vst [vmem:[#allocation1] ss:$4 sm:$0xff] %v875
      %907 = vst [vmem:[%s886] ss:$4 sm:$0xff] %v878
      %908 = vst [vmem:[%s888] ss:$4 sm:$0xff] %v881
      %909 = vst [vmem:[%s890] ss:$4 sm:$0xff] %v884
      %910 = vst [vmem:[%s892] ss:$4 sm:$0xff] %v876
      %911 = vst [vmem:[%s894] ss:$4 sm:$0xff] %v879
      %912 = vst [vmem:[%s896] ss:$4 sm:$0xff] %v882
      %913 = vst [vmem:[%s898] ss:$4 sm:$0xff] %v858
      %v914 = vld.sshfl [vmem:[#allocation1] sm:$0xff pattern:$0x73625140]
      %v915 = vld.sshfl [vmem:[#allocation1 + $0x8] sm:$0xff pattern:$0x73625140]
      %v916 = vld.sshfl [vmem:[#allocation1 + $0x10] sm:$0xff pattern:$0x73625140]
      %v917 = vld.sshfl [vmem:[#allocation1 + $0x18] sm:$0xff pattern:$0x73625140]
      %v918 = vld.sshfl [vmem:[#allocation1 + $0x20] sm:$0xff pattern:$0x73625140]
      %v919 = vld.sshfl [vmem:[#allocation1 + $0x28] sm:$0xff pattern:$0x73625140]
      %932 = vmatpush.msra.mxu0 %v328
      %933 = vmatpush.msra.mxu0 %v327
      %934 = vmatpush.msra.mxu0 %v326
      %935 = vmatpush.msra.mxu0 %v325
      %936 = vmatpush.msra.mxu0 %v324
      %937 = vmatpush.msra.mxu0 %v323
      %938 = vmatpush.msra.mxu0 %v322
      %939 = vmatpush.msra.mxu0 %v321
      %940 = vmatpush.msra.mxu0 %v320
      %941 = vmatpush.msra.mxu0 %v319
      %942 = vmatpush.msra.mxu0 %v318
      %943 = vmatpush.msra.mxu0 %v317
      %944 = vmatpush.msra.mxu0 %v316
      %945 = vmatpush.msra.mxu0 %v315
      %946 = vmatpush.msra.mxu0 %v314
      %947 = vmatpush.msra.mxu0 %v313
      %948 = vmatmul.f32.gmra.mxu0 %v900
      %v949 = vpop.f32.mrf.mxu0
      %v950 = vadd.f32 0.0, %v949
      %951 = vmatmul.f32.gmra.mxu0 %v914
      %v952 = vpop.f32.mrf.mxu0
      %v953 = vadd.f32 0.0, %v952
      %954 = vdwg.mxu0
      %955 = vmatpush.msra.mxu0 %v344
      %956 = vmatpush.msra.mxu0 %v343
      %957 = vmatpush.msra.mxu0 %v342
      %958 = vmatpush.msra.mxu0 %v341
      %959 = vmatpush.msra.mxu0 %v340
      %960 = vmatpush.msra.mxu0 %v339
      %961 = vmatpush.msra.mxu0 %v338
      %962 = vmatpush.msra.mxu0 %v337
      %963 = vmatpush.msra.mxu0 %v336
      %964 = vmatpush.msra.mxu0 %v335
      %965 = vmatpush.msra.mxu0 %v334
      %966 = vmatpush.msra.mxu0 %v333
      %967 = vmatpush.msra.mxu0 %v332
      %968 = vmatpush.msra.mxu0 %v331
      %969 = vmatpush.msra.mxu0 %v330
      %970 = vmatpush.msra.mxu0 %v329
      %971 = vmatmul.f32.gmra.mxu0 %v901
      %v972 = vpop.f32.mrf.mxu0
      %v973 = vadd.f32 %v950, %v972
      %974 = vmatmul.f32.gmra.mxu0 %v915
      %v975 = vpop.f32.mrf.mxu0
      %v976 = vadd.f32 %v953, %v975
      %977 = vdwg.mxu0
      %978 = vmatpush.msra.mxu0 %v360
      %979 = vmatpush.msra.mxu0 %v359
      %980 = vmatpush.msra.mxu0 %v358
      %981 = vmatpush.msra.mxu0 %v357
      %982 = vmatpush.msra.mxu0 %v356
      %983 = vmatpush.msra.mxu0 %v355
      %984 = vmatpush.msra.mxu0 %v354
      %985 = vmatpush.msra.mxu0 %v353
      %986 = vmatpush.msra.mxu0 %v352
      %987 = vmatpush.msra.mxu0 %v351
      %988 = vmatpush.msra.mxu0 %v350
      %989 = vmatpush.msra.mxu0 %v349
      %990 = vmatpush.msra.mxu0 %v348
      %991 = vmatpush.msra.mxu0 %v347
      %992 = vmatpush.msra.mxu0 %v346
      %993 = vmatpush.msra.mxu0 %v345
      %994 = vmatmul.f32.gmra.mxu0 %v902
      %v995 = vpop.f32.mrf.mxu0
      %v996 = vadd.f32 %v973, %v995
      %997 = vmatmul.f32.gmra.mxu0 %v916
      %v998 = vpop.f32.mrf.mxu0
      %v999 = vadd.f32 %v976, %v998
      %1000 = vdwg.mxu0
      %1001 = vmatpush.msra.mxu0 %v376
      %1002 = vmatpush.msra.mxu0 %v375
      %1003 = vmatpush.msra.mxu0 %v374
      %1004 = vmatpush.msra.mxu0 %v373
      %1005 = vmatpush.msra.mxu0 %v372
      %1006 = vmatpush.msra.mxu0 %v371
      %1007 = vmatpush.msra.mxu0 %v370
      %1008 = vmatpush.msra.mxu0 %v369
      %1009 = vmatpush.msra.mxu0 %v368
      %1010 = vmatpush.msra.mxu0 %v367
      %1011 = vmatpush.msra.mxu0 %v366
      %1012 = vmatpush.msra.mxu0 %v365
      %1013 = vmatpush.msra.mxu0 %v364
      %1014 = vmatpush.msra.mxu0 %v363
      %1015 = vmatpush.msra.mxu0 %v362
      %1016 = vmatpush.msra.mxu0 %v361
      %1017 = vmatmul.f32.gmra.mxu0 %v903
      %v1018 = vpop.f32.mrf.mxu0
      %v1019 = vadd.f32 %v996, %v1018
      %1020 = vmatmul.f32.gmra.mxu0 %v917
      %v1021 = vpop.f32.mrf.mxu0
      %v1022 = vadd.f32 %v999, %v1021
      %1023 = vdwg.mxu0
      %1024 = vmatpush.msra.mxu0 %v392
      %1025 = vmatpush.msra.mxu0 %v391
      %1026 = vmatpush.msra.mxu0 %v390
      %1027 = vmatpush.msra.mxu0 %v389
      %1028 = vmatpush.msra.mxu0 %v388
      %1029 = vmatpush.msra.mxu0 %v387
      %1030 = vmatpush.msra.mxu0 %v386
      %1031 = vmatpush.msra.mxu0 %v385
      %1032 = vmatpush.msra.mxu0 %v384
      %1033 = vmatpush.msra.mxu0 %v383
      %1034 = vmatpush.msra.mxu0 %v382
      %1035 = vmatpush.msra.mxu0 %v381
      %1036 = vmatpush.msra.mxu0 %v380
      %1037 = vmatpush.msra.mxu0 %v379
      %1038 = vmatpush.msra.mxu0 %v378
      %1039 = vmatpush.msra.mxu0 %v377
      %1040 = vmatmul.f32.gmra.mxu0 %v904
      %v1041 = vpop.f32.mrf.mxu0
      %v1042 = vadd.f32 %v1019, %v1041
      %1043 = vmatmul.f32.gmra.mxu0 %v918
      %v1044 = vpop.f32.mrf.mxu0
      %v1045 = vadd.f32 %v1022, %v1044
      %1046 = vdwg.mxu0
      %1047 = vmatpush.msra.mxu0 %v408
      %1048 = vmatpush.msra.mxu0 %v407
      %1049 = vmatpush.msra.mxu0 %v406
      %1050 = vmatpush.msra.mxu0 %v405
      %1051 = vmatpush.msra.mxu0 %v404
      %1052 = vmatpush.msra.mxu0 %v403
      %1053 = vmatpush.msra.mxu0 %v402
      %1054 = vmatpush.msra.mxu0 %v401
      %1055 = vmatpush.msra.mxu0 %v400
      %1056 = vmatpush.msra.mxu0 %v399
      %1057 = vmatpush.msra.mxu0 %v398
      %1058 = vmatpush.msra.mxu0 %v397
      %1059 = vmatpush.msra.mxu0 %v396
      %1060 = vmatpush.msra.mxu0 %v395
      %1061 = vmatpush.msra.mxu0 %v394
      %1062 = vmatpush.msra.mxu0 %v393
      %1063 = vmatmul.f32.gmra.mxu0 %v905
      %v1064 = vpop.f32.mrf.mxu0
      %v1065 = vadd.f32 %v1042, %v1064
      %1066 = vmatmul.f32.gmra.mxu0 %v919
      %v1067 = vpop.f32.mrf.mxu0
      %v1068 = vadd.f32 %v1045, %v1067
      %1069 = vdwg.mxu0
      %vm1070 = vcmp.gt.f32.partialorder %v1065, 0.0
      %vm1071 = vcmp.gt.f32.partialorder %v1068, 0.0
      %v1072 = vmul.f32 %v1065, 0.01
      %v1073 = vmul.f32 %v1068, 0.01
      %v1074 = vsel %vm1070, %v1065, %v1072
      %v1075 = vsel %vm1071, %v1068, %v1073
      %vm1076 = vcmask 523264
      %v1078 = vsel %vm1076, %v1074, 0
      %v1081 = vsel %vm1076, %v1075, 0
      %1083 = vmatpush.msra.mxu0 0.0
      %1084 = vmatpush.msra.mxu0 0.0
      %1085 = vmatpush.msra.mxu0 0.0
      %1086 = vmatpush.msra.mxu0 0.0
      %1087 = vmatpush.msra.mxu0 0.0
      %1088 = vmatpush.msra.mxu0 0.0
      %1089 = vmatpush.msra.mxu0 0.0
      %1090 = vmatpush.msra.mxu0 0.0
      %1091 = vmatpush.msra.mxu0 %v423
      %1092 = vmatpush.msra.mxu0 %v421
      %1093 = vmatpush.msra.mxu0 %v419
      %1094 = vmatpush.msra.mxu0 %v417
      %1095 = vmatpush.msra.mxu0 %v415
      %1096 = vmatpush.msra.mxu0 %v413
      %1097 = vmatpush.msra.mxu0 %v411
      %1098 = vmatpush.msra.mxu0 %v409
      %1099 = vmatmul.f32.gmra.mxu0 %v1078
      %v1100 = vpop.f32.mrf.mxu0
      %v1101 = vadd.f32 0.0, %v1100
      %1102 = vmatmul.f32.gmra.mxu0 %v1081
      %v1103 = vpop.f32.mrf.mxu0
      %v1104 = vadd.f32 0.0, %v1103
      %1105 = vdwg.mxu0
      %1106 = vmatpush.msra.mxu0 0.0
      %1107 = vmatpush.msra.mxu0 0.0
      %1108 = vmatpush.msra.mxu0 0.0
      %1109 = vmatpush.msra.mxu0 0.0
      %1110 = vmatpush.msra.mxu0 0.0
      %1111 = vmatpush.msra.mxu0 0.0
      %1112 = vmatpush.msra.mxu0 0.0
      %1113 = vmatpush.msra.mxu0 0.0
      %1114 = vmatpush.msra.mxu0 %v424
      %1115 = vmatpush.msra.mxu0 %v422
      %1116 = vmatpush.msra.mxu0 %v420
      %1117 = vmatpush.msra.mxu0 %v418
      %1118 = vmatpush.msra.mxu0 %v416
      %1119 = vmatpush.msra.mxu0 %v414
      %1120 = vmatpush.msra.mxu0 %v412
      %1121 = vmatpush.msra.mxu0 %v410
      %1122 = vmatmul.f32.gmra.mxu0 %v1078
      %v1123 = vpop.f32.mrf.mxu0
      %v1124 = vadd.f32 0.0, %v1123
      %1125 = vmatmul.f32.gmra.mxu0 %v1081
      %v1126 = vpop.f32.mrf.mxu0
      %v1127 = vadd.f32 0.0, %v1126
      %1128 = vdwg.mxu0
      %v1129 = vxor.u32 %v1101, 2147483648
      %v1130 = vxor.u32 %v1124, 2147483648
      %v1131 = vxor.u32 %v1104, 2147483648
      %v1132 = vxor.u32 %v1127, 2147483648
      %v1133 = vmul.f32 %v1129, 1.442695
      %v1134 = vpow.pop %v1133
      %v1135 = vmul.f32 %v1130, 1.442695
      %v1136 = vpow.pop %v1135
      %v1137 = vmul.f32 %v1131, 1.442695
      %v1138 = vpow.pop %v1137
      %v1139 = vmul.f32 %v1132, 1.442695
      %v1140 = vpow.pop %v1139
      %v1141 = vadd.f32 %v1134, 1.0
      %v1142 = vadd.f32 %v1136, 1.0
      %v1143 = vadd.f32 %v1138, 1.0
      %v1144 = vadd.f32 %v1140, 1.0
      %v1145 = vrcp.pop %v1141
      %v1146 = vmul.f32 %v1141, %v1145
      %v1147 = vsub.f32 1.0, %v1146
      %v1148 = vmul.f32 %v1145, %v1147
      %v1149 = vadd.f32 %v1145, %v1148
      %vm1150 = vweird.f32 %v1141
      %vm1151 = vweird.f32 %v1145
      %vm1152 = vmor %vm1150, %vm1151
      %v1153 = vsel %vm1152, %v1145, %v1149
      %v1154 = vand.u32 2147483647, %v1141
      %vm1155 = vcmp.eq.f32.partialorder %v1154, 8.507059e+37
      %v1156 = vand.u32 %v1141, 2147483648
      %v1157 = vor.u32 1.1754944e-38, %v1156
      %v1158 = vsel %vm1155, %v1157, %v1153
      %v1159 = vmul.f32 1.0, %v1158
      %v1160 = vrcp.pop %v1142
      %v1161 = vmul.f32 %v1142, %v1160
      %v1162 = vsub.f32 1.0, %v1161
      %v1163 = vmul.f32 %v1160, %v1162
      %v1164 = vadd.f32 %v1160, %v1163
      %vm1165 = vweird.f32 %v1142
      %vm1166 = vweird.f32 %v1160
      %vm1167 = vmor %vm1165, %vm1166
      %v1168 = vsel %vm1167, %v1160, %v1164
      %v1169 = vand.u32 2147483647, %v1142
      %vm1170 = vcmp.eq.f32.partialorder %v1169, 8.507059e+37
      %v1171 = vand.u32 %v1142, 2147483648
      %v1172 = vor.u32 1.1754944e-38, %v1171
      %v1173 = vsel %vm1170, %v1172, %v1168
      %v1174 = vmul.f32 1.0, %v1173
      %v1175 = vrcp.pop %v1143
      %v1176 = vmul.f32 %v1143, %v1175
      %v1177 = vsub.f32 1.0, %v1176
      %v1178 = vmul.f32 %v1175, %v1177
      %v1179 = vadd.f32 %v1175, %v1178
      %vm1180 = vweird.f32 %v1143
      %vm1181 = vweird.f32 %v1175
      %vm1182 = vmor %vm1180, %vm1181
      %v1183 = vsel %vm1182, %v1175, %v1179
      %v1184 = vand.u32 2147483647, %v1143
      %vm1185 = vcmp.eq.f32.partialorder %v1184, 8.507059e+37
      %v1186 = vand.u32 %v1143, 2147483648
      %v1187 = vor.u32 1.1754944e-38, %v1186
      %v1188 = vsel %vm1185, %v1187, %v1183
      %v1189 = vmul.f32 1.0, %v1188
      %v1190 = vrcp.pop %v1144
      %v1191 = vmul.f32 %v1144, %v1190
      %v1192 = vsub.f32 1.0, %v1191
      %v1193 = vmul.f32 %v1190, %v1192
      %v1194 = vadd.f32 %v1190, %v1193
      %vm1195 = vweird.f32 %v1144
      %vm1196 = vweird.f32 %v1190
      %vm1197 = vmor %vm1195, %vm1196
      %v1198 = vsel %vm1197, %v1190, %v1194
      %v1199 = vand.u32 2147483647, %v1144
      %vm1200 = vcmp.eq.f32.partialorder %v1199, 8.507059e+37
      %v1201 = vand.u32 %v1144, 2147483648
      %v1202 = vor.u32 1.1754944e-38, %v1201
      %v1203 = vsel %vm1200, %v1202, %v1198
      %v1204 = vmul.f32 1.0, %v1203
      %v1209 = vrot.slane %v1174, 6
      %v1210 = vrot.slane %v1204, 6
      %v1211 = vsel %vm857, %v1159, %v1209
      %vm1212 = vcmask 1043458
      %v1213 = vsel %vm1212, %v1159, %v1209
      %v1214 = vrot.slane %v1213, 2
      %v1215 = vsel %vm859, %v1159, %v1209
      %v1216 = vrot.slane %v1215, 4
      %vm1217 = vcmask 1045504
      %v1218 = vsel %vm1217, %v1209, %v1159
      %v1219 = vrot.slane %v1218, 6
      %v1220 = vsel %vm857, %v1189, %v1210
      %v1221 = vsel %vm1212, %v1189, %v1210
      %v1222 = vrot.slane %v1221, 2
      %v1223 = vsel %vm859, %v1189, %v1210
      %v1224 = vrot.slane %v1223, 4
      %v1225 = vsel %vm1217, %v1210, %v1189
      %v1226 = vrot.slane %v1225, 6
      %1227 = vst [vmem:[#allocation1] ss:$4 sm:$0xff] %v1211
      %v1228 = vld.sshfl [vmem:[#allocation1] sm:$0xff pattern:$0x73625140]
      %v1229 = vld.sshfl [vmem:[#allocation1 + $0x8] sm:$0xff pattern:$0x73625140]
      %s1230 = scalar_lea.vmem [#allocation1], 32
      %1231 = vst [vmem:[%s1230] ss:$4 sm:$0xff] %v1214
      %v1232 = vld.sshfl [vmem:[#allocation1 + $0x20] sm:$0xff pattern:$0x73625140]
      %v1233 = vld.sshfl [vmem:[#allocation1 + $0x28] sm:$0xff pattern:$0x73625140]
      %1234 = vst [vmem:[#allocation1] ss:$4 sm:$0xff] %v1216
      %v1235 = vld.sshfl [vmem:[#allocation1] sm:$0xff pattern:$0x73625140]
      %v1236 = vld.sshfl [vmem:[#allocation1 + $0x8] sm:$0xff pattern:$0x73625140]
      %1237 = vst [vmem:[%s1230] ss:$4 sm:$0xff] %v1219
      %v1238 = vld.sshfl [vmem:[#allocation1 + $0x20] sm:$0xff pattern:$0x73625140]
      %v1239 = vld.sshfl [vmem:[#allocation1 + $0x28] sm:$0xff pattern:$0x73625140]
      %1240 = vst [vmem:[#allocation1] ss:$4 sm:$0xff] %v1220
      %v1241 = vld.sshfl [vmem:[#allocation1] sm:$0xff pattern:$0x73625140]
      %v1242 = vld.sshfl [vmem:[#allocation1 + $0x8] sm:$0xff pattern:$0x73625140]
      %1243 = vst [vmem:[%s1230] ss:$4 sm:$0xff] %v1222
      %v1244 = vld.sshfl [vmem:[#allocation1 + $0x20] sm:$0xff pattern:$0x73625140]
      %v1245 = vld.sshfl [vmem:[#allocation1 + $0x28] sm:$0xff pattern:$0x73625140]
      %1246 = vst [vmem:[#allocation1] ss:$4 sm:$0xff] %v1224
      %v1247 = vld.sshfl [vmem:[#allocation1] sm:$0xff pattern:$0x73625140]
      %v1248 = vld.sshfl [vmem:[#allocation1 + $0x8] sm:$0xff pattern:$0x73625140]
      %1249 = vst [vmem:[%s1230] ss:$4 sm:$0xff] %v1226
      %v1250 = vld.sshfl [vmem:[#allocation1 + $0x20] sm:$0xff pattern:$0x73625140]
      %v1251 = vld.sshfl [vmem:[#allocation1 + $0x28] sm:$0xff pattern:$0x73625140]
      %v1268 = vmul.f32 %v799, %v1228
      %v1269 = vmul.f32 %v800, %v1229
      %v1270 = vmul.f32 %v801, %v1232
      %v1271 = vmul.f32 %v802, %v1233
      %v1272 = vmul.f32 %v803, %v1235
      %v1273 = vmul.f32 %v804, %v1236
      %v1274 = vmul.f32 %v805, %v1238
      %v1275 = vmul.f32 %v806, %v1239
      %v1276 = vmul.f32 %v807, %v1241
      %v1277 = vmul.f32 %v808, %v1242
      %v1278 = vmul.f32 %v809, %v1244
      %v1279 = vmul.f32 %v810, %v1245
      %v1280 = vmul.f32 %v811, %v1247
      %v1281 = vmul.f32 %v812, %v1248
      %v1282 = vmul.f32 %v813, %v1250
      %v1283 = vmul.f32 %v814, %v1251
      %1284 = vst [vmem:[#allocation1] ss:$4 sm:$0xff] %v862
      %s1285 = scalar_lea.vmem [#allocation1], 1
      %1286 = vst [vmem:[%s1285] ss:$4 sm:$0xff] %v866
      %s1287 = scalar_lea.vmem [#allocation1], 2
      %1288 = vst [vmem:[%s1287] ss:$4 sm:$0xff] %v869
      %s1289 = scalar_lea.vmem [#allocation1], 3
      %1290 = vst [vmem:[%s1289] ss:$4 sm:$0xff] %v872
      %s1291 = scalar_lea.vmem [#allocation1], 32
      %1292 = vst [vmem:[%s1291] ss:$4 sm:$0xff] %v863
      %s1293 = scalar_lea.vmem [#allocation1], 33
      %1294 = vst [vmem:[%s1293] ss:$4 sm:$0xff] %v867
      %s1295 = scalar_lea.vmem [#allocation1], 34
      %1296 = vst [vmem:[%s1295] ss:$4 sm:$0xff] %v870
      %s1297 = scalar_lea.vmem [#allocation1], 35
      %1298 = vst [vmem:[%s1297] ss:$4 sm:$0xff] %v873
      %v1299 = vld.sshfl [vmem:[#allocation1] sm:$0xff pattern:$0x73625140]
      %v1300 = vld.sshfl [vmem:[#allocation1 + $0x8] sm:$0xff pattern:$0x73625140]
      %v1301 = vld.sshfl [vmem:[#allocation1 + $0x10] sm:$0xff pattern:$0x73625140]
      %v1302 = vld.sshfl [vmem:[#allocation1 + $0x18] sm:$0xff pattern:$0x73625140]
      %v1303 = vld.sshfl [vmem:[#allocation1 + $0x20] sm:$0xff pattern:$0x73625140]
      %v1304 = vld.sshfl [vmem:[#allocation1 + $0x28] sm:$0xff pattern:$0x73625140]
      %1305 = vst [vmem:[#allocation1] ss:$4 sm:$0xff] %v875
      %1306 = vst [vmem:[%s1285] ss:$4 sm:$0xff] %v878
      %1307 = vst [vmem:[%s1287] ss:$4 sm:$0xff] %v881
      %1308 = vst [vmem:[%s1289] ss:$4 sm:$0xff] %v884
      %1309 = vst [vmem:[%s1291] ss:$4 sm:$0xff] %v876
      %1310 = vst [vmem:[%s1293] ss:$4 sm:$0xff] %v879
      %1311 = vst [vmem:[%s1295] ss:$4 sm:$0xff] %v882
      %1312 = vst [vmem:[%s1297] ss:$4 sm:$0xff] %v858
      %v1313 = vld.sshfl [vmem:[#allocation1] sm:$0xff pattern:$0x73625140]
      %v1314 = vld.sshfl [vmem:[#allocation1 + $0x8] sm:$0xff pattern:$0x73625140]
      %v1315 = vld.sshfl [vmem:[#allocation1 + $0x10] sm:$0xff pattern:$0x73625140]
      %v1316 = vld.sshfl [vmem:[#allocation1 + $0x18] sm:$0xff pattern:$0x73625140]
      %v1317 = vld.sshfl [vmem:[#allocation1 + $0x20] sm:$0xff pattern:$0x73625140]
      %v1318 = vld.sshfl [vmem:[#allocation1 + $0x28] sm:$0xff pattern:$0x73625140]
      %1331 = vmatpush.msra.mxu0 %v440
      %1332 = vmatpush.msra.mxu0 %v439
      %1333 = vmatpush.msra.mxu0 %v438
      %1334 = vmatpush.msra.mxu0 %v437
      %1335 = vmatpush.msra.mxu0 %v436
      %1336 = vmatpush.msra.mxu0 %v435
      %1337 = vmatpush.msra.mxu0 %v434
      %1338 = vmatpush.msra.mxu0 %v433
      %1339 = vmatpush.msra.mxu0 %v432
      %1340 = vmatpush.msra.mxu0 %v431
      %1341 = vmatpush.msra.mxu0 %v430
      %1342 = vmatpush.msra.mxu0 %v429
      %1343 = vmatpush.msra.mxu0 %v428
      %1344 = vmatpush.msra.mxu0 %v427
      %1345 = vmatpush.msra.mxu0 %v426
      %1346 = vmatpush.msra.mxu0 %v425
      %1347 = vmatmul.f32.gmra.mxu0 %v1299
      %v1348 = vpop.f32.mrf.mxu0
      %v1349 = vadd.f32 0.0, %v1348
      %1350 = vmatmul.f32.gmra.mxu0 %v1313
      %v1351 = vpop.f32.mrf.mxu0
      %v1352 = vadd.f32 0.0, %v1351
      %1353 = vdwg.mxu0
      %1354 = vmatpush.msra.mxu0 %v456
      %1355 = vmatpush.msra.mxu0 %v455
      %1356 = vmatpush.msra.mxu0 %v454
      %1357 = vmatpush.msra.mxu0 %v453
      %1358 = vmatpush.msra.mxu0 %v452
      %1359 = vmatpush.msra.mxu0 %v451
      %1360 = vmatpush.msra.mxu0 %v450
      %1361 = vmatpush.msra.mxu0 %v449
      %1362 = vmatpush.msra.mxu0 %v448
      %1363 = vmatpush.msra.mxu0 %v447
      %1364 = vmatpush.msra.mxu0 %v446
      %1365 = vmatpush.msra.mxu0 %v445
      %1366 = vmatpush.msra.mxu0 %v444
      %1367 = vmatpush.msra.mxu0 %v443
      %1368 = vmatpush.msra.mxu0 %v442
      %1369 = vmatpush.msra.mxu0 %v441
      %1370 = vmatmul.f32.gmra.mxu0 %v1300
      %v1371 = vpop.f32.mrf.mxu0
      %v1372 = vadd.f32 %v1349, %v1371
      %1373 = vmatmul.f32.gmra.mxu0 %v1314
      %v1374 = vpop.f32.mrf.mxu0
      %v1375 = vadd.f32 %v1352, %v1374
      %1376 = vdwg.mxu0
      %1377 = vmatpush.msra.mxu0 %v472
      %1378 = vmatpush.msra.mxu0 %v471
      %1379 = vmatpush.msra.mxu0 %v470
      %1380 = vmatpush.msra.mxu0 %v469
      %1381 = vmatpush.msra.mxu0 %v468
      %1382 = vmatpush.msra.mxu0 %v467
      %1383 = vmatpush.msra.mxu0 %v466
      %1384 = vmatpush.msra.mxu0 %v465
      %1385 = vmatpush.msra.mxu0 %v464
      %1386 = vmatpush.msra.mxu0 %v463
      %1387 = vmatpush.msra.mxu0 %v462
      %1388 = vmatpush.msra.mxu0 %v461
      %1389 = vmatpush.msra.mxu0 %v460
      %1390 = vmatpush.msra.mxu0 %v459
      %1391 = vmatpush.msra.mxu0 %v458
      %1392 = vmatpush.msra.mxu0 %v457
      %1393 = vmatmul.f32.gmra.mxu0 %v1301
      %v1394 = vpop.f32.mrf.mxu0
      %v1395 = vadd.f32 %v1372, %v1394
      %1396 = vmatmul.f32.gmra.mxu0 %v1315
      %v1397 = vpop.f32.mrf.mxu0
      %v1398 = vadd.f32 %v1375, %v1397
      %1399 = vdwg.mxu0
      %1400 = vmatpush.msra.mxu0 %v488
      %1401 = vmatpush.msra.mxu0 %v487
      %1402 = vmatpush.msra.mxu0 %v486
      %1403 = vmatpush.msra.mxu0 %v485
      %1404 = vmatpush.msra.mxu0 %v484
      %1405 = vmatpush.msra.mxu0 %v483
      %1406 = vmatpush.msra.mxu0 %v482
      %1407 = vmatpush.msra.mxu0 %v481
      %1408 = vmatpush.msra.mxu0 %v480
      %1409 = vmatpush.msra.mxu0 %v479
      %1410 = vmatpush.msra.mxu0 %v478
      %1411 = vmatpush.msra.mxu0 %v477
      %1412 = vmatpush.msra.mxu0 %v476
      %1413 = vmatpush.msra.mxu0 %v475
      %1414 = vmatpush.msra.mxu0 %v474
      %1415 = vmatpush.msra.mxu0 %v473
      %1416 = vmatmul.f32.gmra.mxu0 %v1302
      %v1417 = vpop.f32.mrf.mxu0
      %v1418 = vadd.f32 %v1395, %v1417
      %1419 = vmatmul.f32.gmra.mxu0 %v1316
      %v1420 = vpop.f32.mrf.mxu0
      %v1421 = vadd.f32 %v1398, %v1420
      %1422 = vdwg.mxu0
      %1423 = vmatpush.msra.mxu0 %v504
      %1424 = vmatpush.msra.mxu0 %v503
      %1425 = vmatpush.msra.mxu0 %v502
      %1426 = vmatpush.msra.mxu0 %v501
      %1427 = vmatpush.msra.mxu0 %v500
      %1428 = vmatpush.msra.mxu0 %v499
      %1429 = vmatpush.msra.mxu0 %v498
      %1430 = vmatpush.msra.mxu0 %v497
      %1431 = vmatpush.msra.mxu0 %v496
      %1432 = vmatpush.msra.mxu0 %v495
      %1433 = vmatpush.msra.mxu0 %v494
      %1434 = vmatpush.msra.mxu0 %v493
      %1435 = vmatpush.msra.mxu0 %v492
      %1436 = vmatpush.msra.mxu0 %v491
      %1437 = vmatpush.msra.mxu0 %v490
      %1438 = vmatpush.msra.mxu0 %v489
      %1439 = vmatmul.f32.gmra.mxu0 %v1303
      %v1440 = vpop.f32.mrf.mxu0
      %v1441 = vadd.f32 %v1418, %v1440
      %1442 = vmatmul.f32.gmra.mxu0 %v1317
      %v1443 = vpop.f32.mrf.mxu0
      %v1444 = vadd.f32 %v1421, %v1443
      %1445 = vdwg.mxu0
      %1446 = vmatpush.msra.mxu0 %v520
      %1447 = vmatpush.msra.mxu0 %v519
      %1448 = vmatpush.msra.mxu0 %v518
      %1449 = vmatpush.msra.mxu0 %v517
      %1450 = vmatpush.msra.mxu0 %v516
      %1451 = vmatpush.msra.mxu0 %v515
      %1452 = vmatpush.msra.mxu0 %v514
      %1453 = vmatpush.msra.mxu0 %v513
      %1454 = vmatpush.msra.mxu0 %v512
      %1455 = vmatpush.msra.mxu0 %v511
      %1456 = vmatpush.msra.mxu0 %v510
      %1457 = vmatpush.msra.mxu0 %v509
      %1458 = vmatpush.msra.mxu0 %v508
      %1459 = vmatpush.msra.mxu0 %v507
      %1460 = vmatpush.msra.mxu0 %v506
      %1461 = vmatpush.msra.mxu0 %v505
      %1462 = vmatmul.f32.gmra.mxu0 %v1304
      %v1463 = vpop.f32.mrf.mxu0
      %v1464 = vadd.f32 %v1441, %v1463
      %1465 = vmatmul.f32.gmra.mxu0 %v1318
      %v1466 = vpop.f32.mrf.mxu0
      %v1467 = vadd.f32 %v1444, %v1466
      %1468 = vdwg.mxu0
      %vm1469 = vcmp.gt.f32.partialorder %v1464, 0.0
      %vm1470 = vcmp.gt.f32.partialorder %v1467, 0.0
      %v1471 = vmul.f32 %v1464, 0.01
      %v1472 = vmul.f32 %v1467, 0.01
      %v1473 = vsel %vm1469, %v1464, %v1471
      %v1474 = vsel %vm1470, %v1467, %v1472
      %v1477 = vrot.slane %v1473, 2
      %v1478 = vrot.slane %v1473, 4
      %v1479 = vrot.slane %v1473, 6
      %v1480 = vrot.slane %v1474, 2
      %v1481 = vrot.slane %v1474, 4
      %v1482 = vrot.slane %v1474, 6
      %1488 = vrot.lane.b32.xlu0 %v1473, 64
      %v1489 = vpop.permute.xlu0 %1488
      %1490 = vrot.lane.b32.xlu0 %v1477, 64
      %v1491 = vpop.permute.xlu0 %1490
      %1492 = vrot.lane.b32.xlu0 %v1478, 64
      %v1493 = vpop.permute.xlu0 %1492
      %1494 = vrot.lane.b32.xlu0 %v1479, 64
      %v1495 = vpop.permute.xlu0 %1494
      %1496 = vrot.lane.b32.xlu0 %v1474, 64
      %v1497 = vpop.permute.xlu0 %1496
      %1498 = vrot.lane.b32.xlu0 %v1480, 64
      %v1499 = vpop.permute.xlu0 %1498
      %1500 = vrot.lane.b32.xlu0 %v1481, 64
      %v1501 = vpop.permute.xlu0 %1500
      %1502 = vrot.lane.b32.xlu0 %v1482, 64
      %v1503 = vpop.permute.xlu0 %1502
      %v1512 = vsel %vm1076, 0.0, %v1489
      %v1513 = vsel %vm1076, %v1473, %v1491
      %v1514 = vsel %vm1076, %v1477, %v1493
      %v1515 = vsel %vm1076, %v1478, %v1495
      %v1516 = vsel %vm1076, %v1479, %v1497
      %v1517 = vsel %vm1076, %v1474, %v1499
      %v1518 = vsel %vm1076, %v1480, %v1501
      %v1519 = vsel %vm1076, %v1481, %v1503
      %v1528 = vrot.slane %v1477, 6
      %v1529 = vrot.slane %v1478, 6
      %v1530 = vrot.slane %v1479, 6
      %v1531 = vrot.slane %v1480, 6
      %v1532 = vrot.slane %v1481, 6
      %v1533 = vrot.slane %v1482, 6
      %v1534 = vsel %vm857, %v1512, %v1528
      %v1535 = vsel %vm857, %v1513, %v1529
      %v1536 = vsel %vm857, %v1514, %v1530
      %v1537 = vsel %vm857, %v1515, %v1482
      %v1538 = vsel %vm857, %v1516, %v1531
      %v1539 = vsel %vm857, %v1517, %v1532
      %v1540 = vsel %vm857, %v1518, %v1533
      %v1541 = vsel %vm857, %v1519, %v832
      %1542 = vst [vmem:[#allocation1] ss:$4 sm:$0xff] %v1534
      %s1543 = scalar_lea.vmem [#allocation1], 1
      %1544 = vst [vmem:[%s1543] ss:$4 sm:$0xff] %v1535
      %s1545 = scalar_lea.vmem [#allocation1], 2
      %1546 = vst [vmem:[%s1545] ss:$4 sm:$0xff] %v1536
      %s1547 = scalar_lea.vmem [#allocation1], 3
      %1548 = vst [vmem:[%s1547] ss:$4 sm:$0xff] %v1537
      %s1549 = scalar_lea.vmem [#allocation1], 32
      %1550 = vst [vmem:[%s1549] ss:$4 sm:$0xff] %v1538
      %s1551 = scalar_lea.vmem [#allocation1], 33
      %1552 = vst [vmem:[%s1551] ss:$4 sm:$0xff] %v1539
      %s1553 = scalar_lea.vmem [#allocation1], 34
      %1554 = vst [vmem:[%s1553] ss:$4 sm:$0xff] %v1540
      %s1555 = scalar_lea.vmem [#allocation1], 35
      %1556 = vst [vmem:[%s1555] ss:$4 sm:$0xff] %v1541
      %v1557 = vld.sshfl [vmem:[#allocation1] sm:$0xff pattern:$0x73625140]
      %v1558 = vld.sshfl [vmem:[#allocation1 + $0x8] sm:$0xff pattern:$0x73625140]
      %v1559 = vld.sshfl [vmem:[#allocation1 + $0x20] sm:$0xff pattern:$0x73625140]
      %v1560 = vld.sshfl [vmem:[#allocation1 + $0x28] sm:$0xff pattern:$0x73625140]
      %v1563 = vsel %vm1076, %v1558, 0
      %v1565 = vsel %vm1076, %v1560, 0
      %1567 = vmatpush.msra.mxu0 %v551
      %1568 = vmatpush.msra.mxu0 %v549
      %1569 = vmatpush.msra.mxu0 %v547
      %1570 = vmatpush.msra.mxu0 %v545
      %1571 = vmatpush.msra.mxu0 %v543
      %1572 = vmatpush.msra.mxu0 %v541
      %1573 = vmatpush.msra.mxu0 %v539
      %1574 = vmatpush.msra.mxu0 %v537
      %1575 = vmatpush.msra.mxu0 %v535
      %1576 = vmatpush.msra.mxu0 %v533
      %1577 = vmatpush.msra.mxu0 %v531
      %1578 = vmatpush.msra.mxu0 %v529
      %1579 = vmatpush.msra.mxu0 %v527
      %1580 = vmatpush.msra.mxu0 %v525
      %1581 = vmatpush.msra.mxu0 %v523
      %1582 = vmatpush.msra.mxu0 %v521
      %1583 = vmatmul.f32.gmra.mxu0 %v1557
      %v1584 = vpop.f32.mrf.mxu0
      %v1585 = vadd.f32 0.0, %v1584
      %1586 = vmatmul.f32.gmra.mxu0 %v1559
      %v1587 = vpop.f32.mrf.mxu0
      %v1588 = vadd.f32 0.0, %v1587
      %1589 = vdwg.mxu0
      %1590 = vmatpush.msra.mxu0 0.0
      %1591 = vmatpush.msra.mxu0 0.0
      %1592 = vmatpush.msra.mxu0 0.0
      %1593 = vmatpush.msra.mxu0 0.0
      %1594 = vmatpush.msra.mxu0 0.0
      %1595 = vmatpush.msra.mxu0 0.0
      %1596 = vmatpush.msra.mxu0 0.0
      %1597 = vmatpush.msra.mxu0 0.0
      %1598 = vmatpush.msra.mxu0 %v567
      %1599 = vmatpush.msra.mxu0 %v565
      %1600 = vmatpush.msra.mxu0 %v563
      %1601 = vmatpush.msra.mxu0 %v561
      %1602 = vmatpush.msra.mxu0 %v559
      %1603 = vmatpush.msra.mxu0 %v557
      %1604 = vmatpush.msra.mxu0 %v555
      %1605 = vmatpush.msra.mxu0 %v553
      %1606 = vmatmul.f32.gmra.mxu0 %v1563
      %v1607 = vpop.f32.mrf.mxu0
      %v1608 = vadd.f32 %v1585, %v1607
      %1609 = vmatmul.f32.gmra.mxu0 %v1565
      %v1610 = vpop.f32.mrf.mxu0
      %v1611 = vadd.f32 %v1588, %v1610
      %1612 = vdwg.mxu0
      %1613 = vmatpush.msra.mxu0 %v552
      %1614 = vmatpush.msra.mxu0 %v550
      %1615 = vmatpush.msra.mxu0 %v548
      %1616 = vmatpush.msra.mxu0 %v546
      %1617 = vmatpush.msra.mxu0 %v544
      %1618 = vmatpush.msra.mxu0 %v542
      %1619 = vmatpush.msra.mxu0 %v540
      %1620 = vmatpush.msra.mxu0 %v538
      %1621 = vmatpush.msra.mxu0 %v536
      %1622 = vmatpush.msra.mxu0 %v534
      %1623 = vmatpush.msra.mxu0 %v532
      %1624 = vmatpush.msra.mxu0 %v530
      %1625 = vmatpush.msra.mxu0 %v528
      %1626 = vmatpush.msra.mxu0 %v526
      %1627 = vmatpush.msra.mxu0 %v524
      %1628 = vmatpush.msra.mxu0 %v522
      %1629 = vmatmul.f32.gmra.mxu0 %v1557
      %v1630 = vpop.f32.mrf.mxu0
      %v1631 = vadd.f32 0.0, %v1630
      %1632 = vmatmul.f32.gmra.mxu0 %v1559
      %v1633 = vpop.f32.mrf.mxu0
      %v1634 = vadd.f32 0.0, %v1633
      %1635 = vdwg.mxu0
      %1636 = vmatpush.msra.mxu0 0.0
      %1637 = vmatpush.msra.mxu0 0.0
      %1638 = vmatpush.msra.mxu0 0.0
      %1639 = vmatpush.msra.mxu0 0.0
      %1640 = vmatpush.msra.mxu0 0.0
      %1641 = vmatpush.msra.mxu0 0.0
      %1642 = vmatpush.msra.mxu0 0.0
      %1643 = vmatpush.msra.mxu0 0.0
      %1644 = vmatpush.msra.mxu0 %v568
      %1645 = vmatpush.msra.mxu0 %v566
      %1646 = vmatpush.msra.mxu0 %v564
      %1647 = vmatpush.msra.mxu0 %v562
      %1648 = vmatpush.msra.mxu0 %v560
      %1649 = vmatpush.msra.mxu0 %v558
      %1650 = vmatpush.msra.mxu0 %v556
      %1651 = vmatpush.msra.mxu0 %v554
      %1652 = vmatmul.f32.gmra.mxu0 %v1563
      %v1653 = vpop.f32.mrf.mxu0
      %v1654 = vadd.f32 %v1631, %v1653
      %1655 = vmatmul.f32.gmra.mxu0 %v1565
      %v1656 = vpop.f32.mrf.mxu0
      %v1657 = vadd.f32 %v1634, %v1656
      %1658 = vdwg.mxu0
      %v1659 = vxor.u32 %v1608, 2147483648
      %v1660 = vxor.u32 %v1654, 2147483648
      %v1661 = vxor.u32 %v1611, 2147483648
      %v1662 = vxor.u32 %v1657, 2147483648
      %v1663 = vmul.f32 %v1659, 1.442695
      %v1664 = vpow.pop %v1663
      %v1665 = vmul.f32 %v1660, 1.442695
      %v1666 = vpow.pop %v1665
      %v1667 = vmul.f32 %v1661, 1.442695
      %v1668 = vpow.pop %v1667
      %v1669 = vmul.f32 %v1662, 1.442695
      %v1670 = vpow.pop %v1669
      %v1671 = vadd.f32 %v1664, 1.0
      %v1672 = vadd.f32 %v1666, 1.0
      %v1673 = vadd.f32 %v1668, 1.0
      %v1674 = vadd.f32 %v1670, 1.0
      %v1675 = vrcp.pop %v1671
      %v1676 = vmul.f32 %v1671, %v1675
      %v1677 = vsub.f32 1.0, %v1676
      %v1678 = vmul.f32 %v1675, %v1677
      %v1679 = vadd.f32 %v1675, %v1678
      %vm1680 = vweird.f32 %v1671
      %vm1681 = vweird.f32 %v1675
      %vm1682 = vmor %vm1680, %vm1681
      %v1683 = vsel %vm1682, %v1675, %v1679
      %v1684 = vand.u32 2147483647, %v1671
      %vm1685 = vcmp.eq.f32.partialorder %v1684, 8.507059e+37
      %v1686 = vand.u32 %v1671, 2147483648
      %v1687 = vor.u32 1.1754944e-38, %v1686
      %v1688 = vsel %vm1685, %v1687, %v1683
      %v1689 = vmul.f32 1.0, %v1688
      %v1690 = vrcp.pop %v1672
      %v1691 = vmul.f32 %v1672, %v1690
      %v1692 = vsub.f32 1.0, %v1691
      %v1693 = vmul.f32 %v1690, %v1692
      %v1694 = vadd.f32 %v1690, %v1693
      %vm1695 = vweird.f32 %v1672
      %vm1696 = vweird.f32 %v1690
      %vm1697 = vmor %vm1695, %vm1696
      %v1698 = vsel %vm1697, %v1690, %v1694
      %v1699 = vand.u32 2147483647, %v1672
      %vm1700 = vcmp.eq.f32.partialorder %v1699, 8.507059e+37
      %v1701 = vand.u32 %v1672, 2147483648
      %v1702 = vor.u32 1.1754944e-38, %v1701
      %v1703 = vsel %vm1700, %v1702, %v1698
      %v1704 = vmul.f32 1.0, %v1703
      %v1705 = vrcp.pop %v1673
      %v1706 = vmul.f32 %v1673, %v1705
      %v1707 = vsub.f32 1.0, %v1706
      %v1708 = vmul.f32 %v1705, %v1707
      %v1709 = vadd.f32 %v1705, %v1708
      %vm1710 = vweird.f32 %v1673
      %vm1711 = vweird.f32 %v1705
      %vm1712 = vmor %vm1710, %vm1711
      %v1713 = vsel %vm1712, %v1705, %v1709
      %v1714 = vand.u32 2147483647, %v1673
      %vm1715 = vcmp.eq.f32.partialorder %v1714, 8.507059e+37
      %v1716 = vand.u32 %v1673, 2147483648
      %v1717 = vor.u32 1.1754944e-38, %v1716
      %v1718 = vsel %vm1715, %v1717, %v1713
      %v1719 = vmul.f32 1.0, %v1718
      %v1720 = vrcp.pop %v1674
      %v1721 = vmul.f32 %v1674, %v1720
      %v1722 = vsub.f32 1.0, %v1721
      %v1723 = vmul.f32 %v1720, %v1722
      %v1724 = vadd.f32 %v1720, %v1723
      %vm1725 = vweird.f32 %v1674
      %vm1726 = vweird.f32 %v1720
      %vm1727 = vmor %vm1725, %vm1726
      %v1728 = vsel %vm1727, %v1720, %v1724
      %v1729 = vand.u32 2147483647, %v1674
      %vm1730 = vcmp.eq.f32.partialorder %v1729, 8.507059e+37
      %v1731 = vand.u32 %v1674, 2147483648
      %v1732 = vor.u32 1.1754944e-38, %v1731
      %v1733 = vsel %vm1730, %v1732, %v1728
      %v1734 = vmul.f32 1.0, %v1733
      %v1739 = vrot.slane %v1704, 6
      %v1740 = vrot.slane %v1734, 6
      %v1741 = vsel %vm857, %v1689, %v1739
      %v1742 = vsel %vm1212, %v1689, %v1739
      %v1743 = vrot.slane %v1742, 2
      %v1744 = vsel %vm859, %v1689, %v1739
      %v1745 = vrot.slane %v1744, 4
      %v1746 = vsel %vm1217, %v1739, %v1689
      %v1747 = vrot.slane %v1746, 6
      %v1748 = vsel %vm857, %v1719, %v1740
      %v1749 = vsel %vm1212, %v1719, %v1740
      %v1750 = vrot.slane %v1749, 2
      %v1751 = vsel %vm859, %v1719, %v1740
      %v1752 = vrot.slane %v1751, 4
      %v1753 = vsel %vm1217, %v1740, %v1719
      %v1754 = vrot.slane %v1753, 6
      %1755 = vst [vmem:[#allocation1] ss:$4 sm:$0xff] %v1741
      %v1756 = vld.sshfl [vmem:[#allocation1] sm:$0xff pattern:$0x73625140]
      %v1757 = vld.sshfl [vmem:[#allocation1 + $0x8] sm:$0xff pattern:$0x73625140]
      %s1758 = scalar_lea.vmem [#allocation1], 32
      %1759 = vst [vmem:[%s1758] ss:$4 sm:$0xff] %v1743
      %v1760 = vld.sshfl [vmem:[#allocation1 + $0x20] sm:$0xff pattern:$0x73625140]
      %v1761 = vld.sshfl [vmem:[#allocation1 + $0x28] sm:$0xff pattern:$0x73625140]
      %1762 = vst [vmem:[#allocation1] ss:$4 sm:$0xff] %v1745
      %v1763 = vld.sshfl [vmem:[#allocation1] sm:$0xff pattern:$0x73625140]
      %v1764 = vld.sshfl [vmem:[#allocation1 + $0x8] sm:$0xff pattern:$0x73625140]
      %1765 = vst [vmem:[%s1758] ss:$4 sm:$0xff] %v1747
      %v1766 = vld.sshfl [vmem:[#allocation1 + $0x20] sm:$0xff pattern:$0x73625140]
      %v1767 = vld.sshfl [vmem:[#allocation1 + $0x28] sm:$0xff pattern:$0x73625140]
      %1768 = vst [vmem:[#allocation1] ss:$4 sm:$0xff] %v1748
      %v1769 = vld.sshfl [vmem:[#allocation1] sm:$0xff pattern:$0x73625140]
      %v1770 = vld.sshfl [vmem:[#allocation1 + $0x8] sm:$0xff pattern:$0x73625140]
      %1771 = vst [vmem:[%s1758] ss:$4 sm:$0xff] %v1750
      %v1772 = vld.sshfl [vmem:[#allocation1 + $0x20] sm:$0xff pattern:$0x73625140]
      %v1773 = vld.sshfl [vmem:[#allocation1 + $0x28] sm:$0xff pattern:$0x73625140]
      %1774 = vst [vmem:[#allocation1] ss:$4 sm:$0xff] %v1752
      %v1775 = vld.sshfl [vmem:[#allocation1] sm:$0xff pattern:$0x73625140]
      %v1776 = vld.sshfl [vmem:[#allocation1 + $0x8] sm:$0xff pattern:$0x73625140]
      %1777 = vst [vmem:[%s1758] ss:$4 sm:$0xff] %v1754
      %v1778 = vld.sshfl [vmem:[#allocation1 + $0x20] sm:$0xff pattern:$0x73625140]
      %v1779 = vld.sshfl [vmem:[#allocation1 + $0x28] sm:$0xff pattern:$0x73625140]
      %v1796 = vmul.f32 %v815, %v1756
      %v1797 = vmul.f32 %v816, %v1757
      %v1798 = vmul.f32 %v817, %v1760
      %v1799 = vmul.f32 %v818, %v1761
      %v1800 = vmul.f32 %v819, %v1763
      %v1801 = vmul.f32 %v820, %v1764
      %v1802 = vmul.f32 %v821, %v1766
      %v1803 = vmul.f32 %v822, %v1767
      %v1804 = vmul.f32 %v823, %v1769
      %v1805 = vmul.f32 %v824, %v1770
      %v1806 = vmul.f32 %v825, %v1772
      %v1807 = vmul.f32 %v826, %v1773
      %v1808 = vmul.f32 %v827, %v1775
      %v1809 = vmul.f32 %v828, %v1776
      %v1810 = vmul.f32 %v829, %v1778
      %v1811 = vmul.f32 %v830, %v1779
      %v1812 = vadd.f32 %v1268, %v1796
      %v1813 = vadd.f32 %v1269, %v1797
      %v1814 = vadd.f32 %v1270, %v1798
      %v1815 = vadd.f32 %v1271, %v1799
      %v1816 = vadd.f32 %v1272, %v1800
      %v1817 = vadd.f32 %v1273, %v1801
      %v1818 = vadd.f32 %v1274, %v1802
      %v1819 = vadd.f32 %v1275, %v1803
      %v1820 = vadd.f32 %v1276, %v1804
      %v1821 = vadd.f32 %v1277, %v1805
      %v1822 = vadd.f32 %v1278, %v1806
      %v1823 = vadd.f32 %v1279, %v1807
      %v1824 = vadd.f32 %v1280, %v1808
      %v1825 = vadd.f32 %v1281, %v1809
      %v1826 = vadd.f32 %v1282, %v1810
      %v1827 = vadd.f32 %v1283, %v1811
      %v1828 = vsel %vm857, %v1812, -inf
      %v1829 = vsel %vm857, %v1814, -inf
      %v1830 = vsel %vm857, %v1816, -inf
      %v1831 = vmax.f32 %v1828, %v1830
      %v1832 = vsel %vm857, %v1818, -inf
      %v1833 = vmax.f32 %v1829, %v1832
      %v1834 = vsel %vm857, %v1820, -inf
      %v1835 = vmax.f32 %v1831, %v1834
      %v1836 = vsel %vm857, %v1822, -inf
      %v1837 = vmax.f32 %v1833, %v1836
      %v1838 = vsel %vm857, %v1824, -inf
      %v1839 = vmax.f32 %v1835, %v1838
      %v1840 = vsel %vm857, %v1826, -inf
      %v1841 = vmax.f32 %v1837, %v1840
      %v1842 = vmax.f32 %v1839, %v1841
      %v1843 = vsel %vm857, %v1813, -inf
      %v1844 = vsel %vm857, %v1815, -inf
      %v1845 = vsel %vm857, %v1817, -inf
      %v1846 = vmax.f32 %v1843, %v1845
      %v1847 = vsel %vm857, %v1819, -inf
      %v1848 = vmax.f32 %v1844, %v1847
      %v1849 = vsel %vm857, %v1821, -inf
      %v1850 = vmax.f32 %v1846, %v1849
      %v1851 = vsel %vm857, %v1823, -inf
      %v1852 = vmax.f32 %v1848, %v1851
      %v1853 = vsel %vm857, %v1825, -inf
      %v1854 = vmax.f32 %v1850, %v1853
      %v1855 = vsel %vm857, %v1827, -inf
      %v1856 = vmax.f32 %v1852, %v1855
      %v1857 = vmax.f32 %v1854, %v1856
      %v1860 = vrot.slane %v1857, 6
      %v1861 = vsel %vm857, %v1842, %v1860
      %1863 = vst [vmem:[%s304] sm:$0xf] %v1861
      %p1864 = scmp.lt.s32.totalorder %s16, 1
      %s1865 = scalar_select %p1864, %s16, 1
      %s1866 = smul.addr %s1865, 2
      %s1867 = smul.addr %s1866, 2
      %s1868 = scalar_lea.vmem %s5, %s1867
      // Predicated region
      $region41: #{temporal_feature_aggregator.1} parent=39 // pred_check
        %p1869 = pneg %p164
      $region42: #{temporal_feature_aggregator.1} parent=39 // pred_check_branch
        %1871 = sbr.rel (%p1869) target = $region44
      $region43: #{temporal_feature_aggregator.1} parent=39 // pred_region
        _
      $region44: #{temporal_feature_aggregator.1} parent=39 // pred_fallthru
        _
    $region40: #{temporal_feature_aggregator.1} parent=5 // pred_fallthru
      _
    %p1872 = scmp.le.s32.totalorder 2, %s11
    // Predicated region
    $region45: #{temporal_feature_aggregator.1} parent=5 // pred_check
      %p1873 = pneg %p1872
    $region46: #{temporal_feature_aggregator.1} parent=5 // pred_check_branch
      %1875 = sbr.rel (%p1873) target = $region48
    $region47: #{temporal_feature_aggregator.1} parent=5 // pred_region
      %s1876 = ssub.s32 %s11, 2
      // Predicated region
      $region49: #{temporal_feature_aggregator.1} parent=47 // pred_check
        %p1877 = pneg %p170
      $region50: #{temporal_feature_aggregator.1} parent=47 // pred_check_branch
        %1879 = sbr.rel (%p1877) target = $region52
      $region51: #{temporal_feature_aggregator.1} parent=47 // pred_region
        %p1880 = scmp.lt.s32.totalorder %s17, 1
        %s1881 = scalar_select %p1880, %s17, 1
        %s1882 = smul.addr %s1881, 2
        %s1883 = smul.addr %s1882, 2
        %s1884 = scalar_lea.vmem %s5, %s1883
      $region52: #{temporal_feature_aggregator.1} parent=47 // pred_fallthru
        _
    $region48: #{temporal_feature_aggregator.1} parent=5 // pred_fallthru
      _
  $region6: #{temporal_feature_aggregator.1} parent=0 // loop_footer
    %s15 = sadd.s32 1, %s11
  $region7: #{temporal_feature_aggregator.1} parent=0 // loop_footer_branch
    %10 = sbr.rel target = $region3
  $region8: #{temporal_feature_aggregator.1} parent=0 // loop_exit
    _

</llo_original>
